<compile_context>
chip_gen: v6e
topology: v6e:2x2x1
jax: 0.10.0
libtpu: 0.0.40
codegen_flags: <defaults>
</compile_context>

<pallas_src>
import jax
import jax.numpy as jnp
from jax.experimental import pallas as pl
from jax.experimental.pallas import tpu as pltpu
import numpy as np


def _round_up(v, m):
    return ((v + m - 1) // m) * m


def lstm_fc_kernel(x_ref, w_ih_ref, w_hh_ref, b_ref, w_fc_ref, b_fc_ref,
                   out_ref):
    """Fused LSTM (T steps) + FC + sigmoid.

    x_ref    : (T*B, I)    time-major input, flattened over (T, B)
    w_ih_ref : (I, 4*Hp)   input->gates weights, gate-padded to Hp lanes each
    w_hh_ref : (Hp, 4*Hp)  hidden->gates weights, zero-padded rows/cols
    b_ref    : (1, 4*Hp)   bias_ih + bias_hh, gate-padded
    w_fc_ref : (Hp, Op)    fc weight.T, zero-padded
    b_fc_ref : (1, Op)     fc bias, zero-padded
    out_ref  : (B, Op)     sigmoid(fc(h_T)); pad lanes sliced off in wrapper
    """
    B = out_ref.shape[0]
    T = x_ref.shape[0] // B
    Hp = w_hh_ref.shape[0]

    w_hh = w_hh_ref[...]

    # Input projection for ALL timesteps: one batched MXU matmul, bias added once.
    gx = (jnp.dot(x_ref[...], w_ih_ref[...],
                  preferred_element_type=jnp.float32)
          + b_ref[...])                                    # (T*B, 4*Hp)

    # Serial recurrence; h/c live in registers, T is static -> fully unrolled.
    h = jnp.zeros((B, Hp), jnp.float32)
    c = jnp.zeros((B, Hp), jnp.float32)
    for t in range(T):
        gates = gx[t * B:(t + 1) * B, :] + jnp.dot(
            h, w_hh, preferred_element_type=jnp.float32)   # (B, 4*Hp)
        # PyTorch gate order [i | f | g | o]; each slice is a 128-lane block.
        i_g = jax.nn.sigmoid(gates[:, 0 * Hp:1 * Hp])
        f_g = jax.nn.sigmoid(gates[:, 1 * Hp:2 * Hp])
        g_g = jnp.tanh(gates[:, 2 * Hp:3 * Hp])
        o_g = jax.nn.sigmoid(gates[:, 3 * Hp:4 * Hp])
        c = f_g * c + i_g * g_g
        h = o_g * jnp.tanh(c)
        # Pad lanes of h/c stay exactly zero: weights/bias are zero there, so
        # gates_pad = 0, i/f/o_pad = 0.5, g_pad = 0 -> c_pad = 0, h_pad = 0.

    # fc(h_T) + sigmoid, lane-dense (B, Op) store.
    logits = (jnp.dot(h, w_fc_ref[...], preferred_element_type=jnp.float32)
              + b_fc_ref[...])
    out_ref[...] = jax.nn.sigmoid(logits)


@jax.jit
def lstm_model_forward(x_btI, w_ih, w_hh, b_ih, b_hh, w_fc, b_fc):
    """x_btI: (B, T, I) float32, PyTorch batch_first layout.

    PyTorch parameter shapes: w_ih (4H, I), w_hh (4H, H), b_ih/b_hh (4H,),
    w_fc (O, H), b_fc (O,).  Returns (B, O) float32.
    """
    B, T, I = x_btI.shape
    H = w_hh.shape[1]
    O = w_fc.shape[0]
    Hp = max(128, _round_up(H, 128))      # per-gate lane padding
    Op = max(128, _round_up(O, 128))      # lane-dense output padding
    f32 = jnp.float32

    # Time-major + flattened (T*B, I) so the kernel does one input projection.
    x_flat = jnp.transpose(x_btI, (1, 0, 2)).reshape(T * B, I).astype(f32)

    # Gate-padded weight / bias layouts (zeros in pad lanes keep the math exact).
    w_ih_p = jnp.zeros((I, 4 * Hp), f32)
    w_hh_p = jnp.zeros((Hp, 4 * Hp), f32)
    b_p = jnp.zeros((1, 4 * Hp), f32)
    b_sum = (b_ih + b_hh).astype(f32)
    for k in range(4):
        w_ih_p = w_ih_p.at[:, k * Hp:k * Hp + H].set(
            w_ih[k * H:(k + 1) * H, :].T.astype(f32))
        w_hh_p = w_hh_p.at[:H, k * Hp:k * Hp + H].set(
            w_hh[k * H:(k + 1) * H, :].T.astype(f32))
        b_p = b_p.at[0, k * Hp:k * Hp + H].set(b_sum[k * H:(k + 1) * H])

    w_fc_p = jnp.zeros((Hp, Op), f32).at[:H, :O].set(w_fc.T.astype(f32))
    b_fc_p = jnp.zeros((1, Op), f32).at[0, :O].set(b_fc.astype(f32))

    vmem = pl.BlockSpec(memory_space=pltpu.MemorySpace.VMEM)
    out_padded = pl.pallas_call(
        lstm_fc_kernel,
        out_shape=jax.ShapeDtypeStruct((B, Op), f32),
        in_specs=[vmem] * 6,
        out_specs=vmem,
    )(x_flat, w_ih_p, w_hh_p, b_p, w_fc_p, b_fc_p)

    return out_padded[:, :O]


def _reference_forward(x, w_ih, w_hh, b_ih, b_hh, w_fc, b_fc):
    """Pure-JAX reference of the PyTorch forward, for verification."""
    B, T, I = x.shape
    H = w_hh.shape[1]
    h = jnp.zeros((B, H), jnp.float32)
    c = jnp.zeros((B, H), jnp.float32)
    for t in range(T):
        gates = x[:, t, :] @ w_ih.T + h @ w_hh.T + b_ih + b_hh
        i = jax.nn.sigmoid(gates[:, 0 * H:1 * H])
        f = jax.nn.sigmoid(gates[:, 1 * H:2 * H])
        g = jnp.tanh(gates[:, 2 * H:3 * H])
        o = jax.nn.sigmoid(gates[:, 3 * H:4 * H])
        c = f * c + i * g
        h = o * jnp.tanh(c)
    return jax.nn.sigmoid(h @ w_fc.T + b_fc)


if __name__ == "__main__":
    # Small shapes consistent with the module: x is (batch, seq, input_size).
    B, T, I = 2, 8, 16
    H, O = 64, 7   # hidden_size=64, output_size=7 (module defaults)

    key = jax.random.PRNGKey(0)
    keys = jax.random.split(key, 7)
    bound = 1.0 / np.sqrt(H)   # PyTorch LSTM / Linear init range

    x = jax.random.normal(keys[0], (B, T, I), dtype=jnp.float32)
    w_ih = jax.random.uniform(keys[1], (4 * H, I), minval=-bound, maxval=bound)
    w_hh = jax.random.uniform(keys[2], (4 * H, H), minval=-bound, maxval=bound)
    b_ih = jax.random.uniform(keys[3], (4 * H,), minval=-bound, maxval=bound)
    b_hh = jax.random.uniform(keys[4], (4 * H,), minval=-bound, maxval=bound)
    w_fc = jax.random.uniform(keys[5], (O, H), minval=-bound, maxval=bound)
    b_fc = jax.random.uniform(keys[6], (O,), minval=-bound, maxval=bound)

    out = lstm_model_forward(x, w_ih, w_hh, b_ih, b_hh, w_fc, b_fc)
    out = jax.block_until_ready(out)

    ref = _reference_forward(x, w_ih, w_hh, b_ih, b_hh, w_fc, b_fc)
    np.testing.assert_allclose(np.asarray(out), np.asarray(ref),
                               rtol=1e-5, atol=1e-5)
    assert out.shape == (B, O)
    print("KERNEL_OK")
</pallas_src>

<mosaic_0001>
module attributes {stable_mosaic.version = 11 : i64} {
  func.func @lstm_fc_kernel(%arg0: memref<16x16xf32, #tpu.memory_space<vmem>>, %arg1: memref<16x512xf32, #tpu.memory_space<vmem>>, %arg2: memref<128x512xf32, #tpu.memory_space<vmem>>, %arg3: memref<1x512xf32, #tpu.memory_space<vmem>>, %arg4: memref<128x128xf32, #tpu.memory_space<vmem>>, %arg5: memref<1x128xf32, #tpu.memory_space<vmem>>, %arg6: memref<2x128xf32, #tpu.memory_space<vmem>>) attributes {dimension_semantics = [], scalar_prefetch = 0 : i64, scratch_operands = 0 : i64, tpu.core_type = #tpu.core_type<tc>} {
    %c0 = arith.constant 0 : index
    %c0_0 = arith.constant 0 : index
    %0 = vector.load %arg2[%c0, %c0_0] : memref<128x512xf32, #tpu.memory_space<vmem>>, vector<128x512xf32>
    %c0_1 = arith.constant 0 : index
    %c0_2 = arith.constant 0 : index
    %1 = vector.load %arg0[%c0_1, %c0_2] : memref<16x16xf32, #tpu.memory_space<vmem>>, vector<16x16xf32>
    %c0_3 = arith.constant 0 : index
    %c0_4 = arith.constant 0 : index
    %2 = vector.load %arg1[%c0_3, %c0_4] : memref<16x512xf32, #tpu.memory_space<vmem>>, vector<16x512xf32>
    %cst = arith.constant dense<0.000000e+00> : vector<16x512xf32>
    %3 = tpu.matmul %1, %2, %cst {dimension_numbers = #tpu.dot_dimension_numbers<[1], [0], [0], [1], [0, 0, 1, 1], [], []>} : vector<16x16xf32>, vector<16x512xf32>, vector<16x512xf32> -> vector<16x512xf32>
    %c0_5 = arith.constant 0 : index
    %c0_6 = arith.constant 0 : index
    %4 = vector.load %arg3[%c0_5, %c0_6] : memref<1x512xf32, #tpu.memory_space<vmem>>, vector<1x512xf32>
    %5 = vector.broadcast %4 : vector<1x512xf32> to vector<16x512xf32>
    %6 = arith.addf %3, %5 : vector<16x512xf32>
    %cst_7 = arith.constant 0.000000e+00 : f32
    %7 = vector.broadcast %cst_7 : f32 to vector<2x128xf32>
    %cst_8 = arith.constant 0.000000e+00 : f32
    %8 = vector.broadcast %cst_8 : f32 to vector<2x128xf32>
    %9 = vector.extract_strided_slice %6 {offsets = [0, 0], sizes = [2, 512], strides = [1, 1]} : vector<16x512xf32> to vector<2x512xf32>
    %cst_9 = arith.constant dense<0.000000e+00> : vector<2x512xf32>
    %10 = tpu.matmul %7, %0, %cst_9 {dimension_numbers = #tpu.dot_dimension_numbers<[1], [0], [0], [1], [0, 0, 1, 1], [], []>} : vector<2x128xf32>, vector<128x512xf32>, vector<2x512xf32> -> vector<2x512xf32>
    %11 = arith.addf %9, %10 : vector<2x512xf32>
    %12 = vector.extract_strided_slice %11 {offsets = [0, 0], sizes = [2, 128], strides = [1, 1]} : vector<2x512xf32> to vector<2x128xf32>
    %13 = arith.negf %12 : vector<2x128xf32>
    %14 = math.exp %13 : vector<2x128xf32>
    %cst_10 = arith.constant 1.000000e+00 : f32
    %15 = vector.broadcast %cst_10 : f32 to vector<2x128xf32>
    %16 = arith.addf %15, %14 : vector<2x128xf32>
    %17 = arith.divf %15, %16 : vector<2x128xf32>
    %18 = vector.extract_strided_slice %11 {offsets = [0, 128], sizes = [2, 128], strides = [1, 1]} : vector<2x512xf32> to vector<2x128xf32>
    %19 = arith.negf %18 : vector<2x128xf32>
    %20 = math.exp %19 : vector<2x128xf32>
    %cst_11 = arith.constant 1.000000e+00 : f32
    %21 = vector.broadcast %cst_11 : f32 to vector<2x128xf32>
    %22 = arith.addf %21, %20 : vector<2x128xf32>
    %23 = arith.divf %21, %22 : vector<2x128xf32>
    %24 = vector.extract_strided_slice %11 {offsets = [0, 256], sizes = [2, 128], strides = [1, 1]} : vector<2x512xf32> to vector<2x128xf32>
    %25 = math.tanh %24 : vector<2x128xf32>
    %26 = vector.extract_strided_slice %11 {offsets = [0, 384], sizes = [2, 128], strides = [1, 1]} : vector<2x512xf32> to vector<2x128xf32>
    %27 = arith.negf %26 : vector<2x128xf32>
    %28 = math.exp %27 : vector<2x128xf32>
    %cst_12 = arith.constant 1.000000e+00 : f32
    %29 = vector.broadcast %cst_12 : f32 to vector<2x128xf32>
    %30 = arith.addf %29, %28 : vector<2x128xf32>
    %31 = arith.divf %29, %30 : vector<2x128xf32>
    %32 = arith.mulf %23, %8 : vector<2x128xf32>
    %33 = arith.mulf %17, %25 : vector<2x128xf32>
    %34 = arith.addf %32, %33 : vector<2x128xf32>
    %35 = math.tanh %34 : vector<2x128xf32>
    %36 = arith.mulf %31, %35 : vector<2x128xf32>
    %37 = vector.extract_strided_slice %6 {offsets = [2, 0], sizes = [2, 512], strides = [1, 1]} : vector<16x512xf32> to vector<2x512xf32>
    %cst_13 = arith.constant dense<0.000000e+00> : vector<2x512xf32>
    %38 = tpu.matmul %36, %0, %cst_13 {dimension_numbers = #tpu.dot_dimension_numbers<[1], [0], [0], [1], [0, 0, 1, 1], [], []>} : vector<2x128xf32>, vector<128x512xf32>, vector<2x512xf32> -> vector<2x512xf32>
    %39 = arith.addf %37, %38 : vector<2x512xf32>
    %40 = vector.extract_strided_slice %39 {offsets = [0, 0], sizes = [2, 128], strides = [1, 1]} : vector<2x512xf32> to vector<2x128xf32>
    %41 = arith.negf %40 : vector<2x128xf32>
    %42 = math.exp %41 : vector<2x128xf32>
    %cst_14 = arith.constant 1.000000e+00 : f32
    %43 = vector.broadcast %cst_14 : f32 to vector<2x128xf32>
    %44 = arith.addf %43, %42 : vector<2x128xf32>
    %45 = arith.divf %43, %44 : vector<2x128xf32>
    %46 = vector.extract_strided_slice %39 {offsets = [0, 128], sizes = [2, 128], strides = [1, 1]} : vector<2x512xf32> to vector<2x128xf32>
    %47 = arith.negf %46 : vector<2x128xf32>
    %48 = math.exp %47 : vector<2x128xf32>
    %cst_15 = arith.constant 1.000000e+00 : f32
    %49 = vector.broadcast %cst_15 : f32 to vector<2x128xf32>
    %50 = arith.addf %49, %48 : vector<2x128xf32>
    %51 = arith.divf %49, %50 : vector<2x128xf32>
    %52 = vector.extract_strided_slice %39 {offsets = [0, 256], sizes = [2, 128], strides = [1, 1]} : vector<2x512xf32> to vector<2x128xf32>
    %53 = math.tanh %52 : vector<2x128xf32>
    %54 = vector.extract_strided_slice %39 {offsets = [0, 384], sizes = [2, 128], strides = [1, 1]} : vector<2x512xf32> to vector<2x128xf32>
    %55 = arith.negf %54 : vector<2x128xf32>
    %56 = math.exp %55 : vector<2x128xf32>
    %cst_16 = arith.constant 1.000000e+00 : f32
    %57 = vector.broadcast %cst_16 : f32 to vector<2x128xf32>
    %58 = arith.addf %57, %56 : vector<2x128xf32>
    %59 = arith.divf %57, %58 : vector<2x128xf32>
    %60 = arith.mulf %51, %34 : vector<2x128xf32>
    %61 = arith.mulf %45, %53 : vector<2x128xf32>
    %62 = arith.addf %60, %61 : vector<2x128xf32>
    %63 = math.tanh %62 : vector<2x128xf32>
    %64 = arith.mulf %59, %63 : vector<2x128xf32>
    %65 = vector.extract_strided_slice %6 {offsets = [4, 0], sizes = [2, 512], strides = [1, 1]} : vector<16x512xf32> to vector<2x512xf32>
    %cst_17 = arith.constant dense<0.000000e+00> : vector<2x512xf32>
    %66 = tpu.matmul %64, %0, %cst_17 {dimension_numbers = #tpu.dot_dimension_numbers<[1], [0], [0], [1], [0, 0, 1, 1], [], []>} : vector<2x128xf32>, vector<128x512xf32>, vector<2x512xf32> -> vector<2x512xf32>
    %67 = arith.addf %65, %66 : vector<2x512xf32>
    %68 = vector.extract_strided_slice %67 {offsets = [0, 0], sizes = [2, 128], strides = [1, 1]} : vector<2x512xf32> to vector<2x128xf32>
    %69 = arith.negf %68 : vector<2x128xf32>
    %70 = math.exp %69 : vector<2x128xf32>
    %cst_18 = arith.constant 1.000000e+00 : f32
    %71 = vector.broadcast %cst_18 : f32 to vector<2x128xf32>
    %72 = arith.addf %71, %70 : vector<2x128xf32>
    %73 = arith.divf %71, %72 : vector<2x128xf32>
    %74 = vector.extract_strided_slice %67 {offsets = [0, 128], sizes = [2, 128], strides = [1, 1]} : vector<2x512xf32> to vector<2x128xf32>
    %75 = arith.negf %74 : vector<2x128xf32>
    %76 = math.exp %75 : vector<2x128xf32>
    %cst_19 = arith.constant 1.000000e+00 : f32
    %77 = vector.broadcast %cst_19 : f32 to vector<2x128xf32>
    %78 = arith.addf %77, %76 : vector<2x128xf32>
    %79 = arith.divf %77, %78 : vector<2x128xf32>
    %80 = vector.extract_strided_slice %67 {offsets = [0, 256], sizes = [2, 128], strides = [1, 1]} : vector<2x512xf32> to vector<2x128xf32>
    %81 = math.tanh %80 : vector<2x128xf32>
    %82 = vector.extract_strided_slice %67 {offsets = [0, 384], sizes = [2, 128], strides = [1, 1]} : vector<2x512xf32> to vector<2x128xf32>
    %83 = arith.negf %82 : vector<2x128xf32>
    %84 = math.exp %83 : vector<2x128xf32>
    %cst_20 = arith.constant 1.000000e+00 : f32
    %85 = vector.broadcast %cst_20 : f32 to vector<2x128xf32>
    %86 = arith.addf %85, %84 : vector<2x128xf32>
    %87 = arith.divf %85, %86 : vector<2x128xf32>
    %88 = arith.mulf %79, %62 : vector<2x128xf32>
    %89 = arith.mulf %73, %81 : vector<2x128xf32>
    %90 = arith.addf %88, %89 : vector<2x128xf32>
    %91 = math.tanh %90 : vector<2x128xf32>
    %92 = arith.mulf %87, %91 : vector<2x128xf32>
    %93 = vector.extract_strided_slice %6 {offsets = [6, 0], sizes = [2, 512], strides = [1, 1]} : vector<16x512xf32> to vector<2x512xf32>
    %cst_21 = arith.constant dense<0.000000e+00> : vector<2x512xf32>
    %94 = tpu.matmul %92, %0, %cst_21 {dimension_numbers = #tpu.dot_dimension_numbers<[1], [0], [0], [1], [0, 0, 1, 1], [], []>} : vector<2x128xf32>, vector<128x512xf32>, vector<2x512xf32> -> vector<2x512xf32>
    %95 = arith.addf %93, %94 : vector<2x512xf32>
    %96 = vector.extract_strided_slice %95 {offsets = [0, 0], sizes = [2, 128], strides = [1, 1]} : vector<2x512xf32> to vector<2x128xf32>
    %97 = arith.negf %96 : vector<2x128xf32>
    %98 = math.exp %97 : vector<2x128xf32>
    %cst_22 = arith.constant 1.000000e+00 : f32
    %99 = vector.broadcast %cst_22 : f32 to vector<2x128xf32>
    %100 = arith.addf %99, %98 : vector<2x128xf32>
    %101 = arith.divf %99, %100 : vector<2x128xf32>
    %102 = vector.extract_strided_slice %95 {offsets = [0, 128], sizes = [2, 128], strides = [1, 1]} : vector<2x512xf32> to vector<2x128xf32>
    %103 = arith.negf %102 : vector<2x128xf32>
    %104 = math.exp %103 : vector<2x128xf32>
    %cst_23 = arith.constant 1.000000e+00 : f32
    %105 = vector.broadcast %cst_23 : f32 to vector<2x128xf32>
    %106 = arith.addf %105, %104 : vector<2x128xf32>
    %107 = arith.divf %105, %106 : vector<2x128xf32>
    %108 = vector.extract_strided_slice %95 {offsets = [0, 256], sizes = [2, 128], strides = [1, 1]} : vector<2x512xf32> to vector<2x128xf32>
    %109 = math.tanh %108 : vector<2x128xf32>
    %110 = vector.extract_strided_slice %95 {offsets = [0, 384], sizes = [2, 128], strides = [1, 1]} : vector<2x512xf32> to vector<2x128xf32>
    %111 = arith.negf %110 : vector<2x128xf32>
    %112 = math.exp %111 : vector<2x128xf32>
    %cst_24 = arith.constant 1.000000e+00 : f32
    %113 = vector.broadcast %cst_24 : f32 to vector<2x128xf32>
    %114 = arith.addf %113, %112 : vector<2x128xf32>
    %115 = arith.divf %113, %114 : vector<2x128xf32>
    %116 = arith.mulf %107, %90 : vector<2x128xf32>
    %117 = arith.mulf %101, %109 : vector<2x128xf32>
    %118 = arith.addf %116, %117 : vector<2x128xf32>
    %119 = math.tanh %118 : vector<2x128xf32>
    %120 = arith.mulf %115, %119 : vector<2x128xf32>
    %121 = vector.extract_strided_slice %6 {offsets = [8, 0], sizes = [2, 512], strides = [1, 1]} : vector<16x512xf32> to vector<2x512xf32>
    %cst_25 = arith.constant dense<0.000000e+00> : vector<2x512xf32>
    %122 = tpu.matmul %120, %0, %cst_25 {dimension_numbers = #tpu.dot_dimension_numbers<[1], [0], [0], [1], [0, 0, 1, 1], [], []>} : vector<2x128xf32>, vector<128x512xf32>, vector<2x512xf32> -> vector<2x512xf32>
    %123 = arith.addf %121, %122 : vector<2x512xf32>
    %124 = vector.extract_strided_slice %123 {offsets = [0, 0], sizes = [2, 128], strides = [1, 1]} : vector<2x512xf32> to vector<2x128xf32>
    %125 = arith.negf %124 : vector<2x128xf32>
    %126 = math.exp %125 : vector<2x128xf32>
    %cst_26 = arith.constant 1.000000e+00 : f32
    %127 = vector.broadcast %cst_26 : f32 to vector<2x128xf32>
    %128 = arith.addf %127, %126 : vector<2x128xf32>
    %129 = arith.divf %127, %128 : vector<2x128xf32>
    %130 = vector.extract_strided_slice %123 {offsets = [0, 128], sizes = [2, 128], strides = [1, 1]} : vector<2x512xf32> to vector<2x128xf32>
    %131 = arith.negf %130 : vector<2x128xf32>
    %132 = math.exp %131 : vector<2x128xf32>
    %cst_27 = arith.constant 1.000000e+00 : f32
    %133 = vector.broadcast %cst_27 : f32 to vector<2x128xf32>
    %134 = arith.addf %133, %132 : vector<2x128xf32>
    %135 = arith.divf %133, %134 : vector<2x128xf32>
    %136 = vector.extract_strided_slice %123 {offsets = [0, 256], sizes = [2, 128], strides = [1, 1]} : vector<2x512xf32> to vector<2x128xf32>
    %137 = math.tanh %136 : vector<2x128xf32>
    %138 = vector.extract_strided_slice %123 {offsets = [0, 384], sizes = [2, 128], strides = [1, 1]} : vector<2x512xf32> to vector<2x128xf32>
    %139 = arith.negf %138 : vector<2x128xf32>
    %140 = math.exp %139 : vector<2x128xf32>
    %cst_28 = arith.constant 1.000000e+00 : f32
    %141 = vector.broadcast %cst_28 : f32 to vector<2x128xf32>
    %142 = arith.addf %141, %140 : vector<2x128xf32>
    %143 = arith.divf %141, %142 : vector<2x128xf32>
    %144 = arith.mulf %135, %118 : vector<2x128xf32>
    %145 = arith.mulf %129, %137 : vector<2x128xf32>
    %146 = arith.addf %144, %145 : vector<2x128xf32>
    %147 = math.tanh %146 : vector<2x128xf32>
    %148 = arith.mulf %143, %147 : vector<2x128xf32>
    %149 = vector.extract_strided_slice %6 {offsets = [10, 0], sizes = [2, 512], strides = [1, 1]} : vector<16x512xf32> to vector<2x512xf32>
    %cst_29 = arith.constant dense<0.000000e+00> : vector<2x512xf32>
    %150 = tpu.matmul %148, %0, %cst_29 {dimension_numbers = #tpu.dot_dimension_numbers<[1], [0], [0], [1], [0, 0, 1, 1], [], []>} : vector<2x128xf32>, vector<128x512xf32>, vector<2x512xf32> -> vector<2x512xf32>
    %151 = arith.addf %149, %150 : vector<2x512xf32>
    %152 = vector.extract_strided_slice %151 {offsets = [0, 0], sizes = [2, 128], strides = [1, 1]} : vector<2x512xf32> to vector<2x128xf32>
    %153 = arith.negf %152 : vector<2x128xf32>
    %154 = math.exp %153 : vector<2x128xf32>
    %cst_30 = arith.constant 1.000000e+00 : f32
    %155 = vector.broadcast %cst_30 : f32 to vector<2x128xf32>
    %156 = arith.addf %155, %154 : vector<2x128xf32>
    %157 = arith.divf %155, %156 : vector<2x128xf32>
    %158 = vector.extract_strided_slice %151 {offsets = [0, 128], sizes = [2, 128], strides = [1, 1]} : vector<2x512xf32> to vector<2x128xf32>
    %159 = arith.negf %158 : vector<2x128xf32>
    %160 = math.exp %159 : vector<2x128xf32>
    %cst_31 = arith.constant 1.000000e+00 : f32
    %161 = vector.broadcast %cst_31 : f32 to vector<2x128xf32>
    %162 = arith.addf %161, %160 : vector<2x128xf32>
    %163 = arith.divf %161, %162 : vector<2x128xf32>
    %164 = vector.extract_strided_slice %151 {offsets = [0, 256], sizes = [2, 128], strides = [1, 1]} : vector<2x512xf32> to vector<2x128xf32>
    %165 = math.tanh %164 : vector<2x128xf32>
    %166 = vector.extract_strided_slice %151 {offsets = [0, 384], sizes = [2, 128], strides = [1, 1]} : vector<2x512xf32> to vector<2x128xf32>
    %167 = arith.negf %166 : vector<2x128xf32>
    %168 = math.exp %167 : vector<2x128xf32>
    %cst_32 = arith.constant 1.000000e+00 : f32
    %169 = vector.broadcast %cst_32 : f32 to vector<2x128xf32>
    %170 = arith.addf %169, %168 : vector<2x128xf32>
    %171 = arith.divf %169, %170 : vector<2x128xf32>
    %172 = arith.mulf %163, %146 : vector<2x128xf32>
    %173 = arith.mulf %157, %165 : vector<2x128xf32>
    %174 = arith.addf %172, %173 : vector<2x128xf32>
    %175 = math.tanh %174 : vector<2x128xf32>
    %176 = arith.mulf %171, %175 : vector<2x128xf32>
    %177 = vector.extract_strided_slice %6 {offsets = [12, 0], sizes = [2, 512], strides = [1, 1]} : vector<16x512xf32> to vector<2x512xf32>
    %cst_33 = arith.constant dense<0.000000e+00> : vector<2x512xf32>
    %178 = tpu.matmul %176, %0, %cst_33 {dimension_numbers = #tpu.dot_dimension_numbers<[1], [0], [0], [1], [0, 0, 1, 1], [], []>} : vector<2x128xf32>, vector<128x512xf32>, vector<2x512xf32> -> vector<2x512xf32>
    %179 = arith.addf %177, %178 : vector<2x512xf32>
    %180 = vector.extract_strided_slice %179 {offsets = [0, 0], sizes = [2, 128], strides = [1, 1]} : vector<2x512xf32> to vector<2x128xf32>
    %181 = arith.negf %180 : vector<2x128xf32>
    %182 = math.exp %181 : vector<2x128xf32>
    %cst_34 = arith.constant 1.000000e+00 : f32
    %183 = vector.broadcast %cst_34 : f32 to vector<2x128xf32>
    %184 = arith.addf %183, %182 : vector<2x128xf32>
    %185 = arith.divf %183, %184 : vector<2x128xf32>
    %186 = vector.extract_strided_slice %179 {offsets = [0, 128], sizes = [2, 128], strides = [1, 1]} : vector<2x512xf32> to vector<2x128xf32>
    %187 = arith.negf %186 : vector<2x128xf32>
    %188 = math.exp %187 : vector<2x128xf32>
    %cst_35 = arith.constant 1.000000e+00 : f32
    %189 = vector.broadcast %cst_35 : f32 to vector<2x128xf32>
    %190 = arith.addf %189, %188 : vector<2x128xf32>
    %191 = arith.divf %189, %190 : vector<2x128xf32>
    %192 = vector.extract_strided_slice %179 {offsets = [0, 256], sizes = [2, 128], strides = [1, 1]} : vector<2x512xf32> to vector<2x128xf32>
    %193 = math.tanh %192 : vector<2x128xf32>
    %194 = vector.extract_strided_slice %179 {offsets = [0, 384], sizes = [2, 128], strides = [1, 1]} : vector<2x512xf32> to vector<2x128xf32>
    %195 = arith.negf %194 : vector<2x128xf32>
    %196 = math.exp %195 : vector<2x128xf32>
    %cst_36 = arith.constant 1.000000e+00 : f32
    %197 = vector.broadcast %cst_36 : f32 to vector<2x128xf32>
    %198 = arith.addf %197, %196 : vector<2x128xf32>
    %199 = arith.divf %197, %198 : vector<2x128xf32>
    %200 = arith.mulf %191, %174 : vector<2x128xf32>
    %201 = arith.mulf %185, %193 : vector<2x128xf32>
    %202 = arith.addf %200, %201 : vector<2x128xf32>
    %203 = math.tanh %202 : vector<2x128xf32>
    %204 = arith.mulf %199, %203 : vector<2x128xf32>
    %205 = vector.extract_strided_slice %6 {offsets = [14, 0], sizes = [2, 512], strides = [1, 1]} : vector<16x512xf32> to vector<2x512xf32>
    %cst_37 = arith.constant dense<0.000000e+00> : vector<2x512xf32>
    %206 = tpu.matmul %204, %0, %cst_37 {dimension_numbers = #tpu.dot_dimension_numbers<[1], [0], [0], [1], [0, 0, 1, 1], [], []>} : vector<2x128xf32>, vector<128x512xf32>, vector<2x512xf32> -> vector<2x512xf32>
    %207 = arith.addf %205, %206 : vector<2x512xf32>
    %208 = vector.extract_strided_slice %207 {offsets = [0, 0], sizes = [2, 128], strides = [1, 1]} : vector<2x512xf32> to vector<2x128xf32>
    %209 = arith.negf %208 : vector<2x128xf32>
    %210 = math.exp %209 : vector<2x128xf32>
    %cst_38 = arith.constant 1.000000e+00 : f32
    %211 = vector.broadcast %cst_38 : f32 to vector<2x128xf32>
    %212 = arith.addf %211, %210 : vector<2x128xf32>
    %213 = arith.divf %211, %212 : vector<2x128xf32>
    %214 = vector.extract_strided_slice %207 {offsets = [0, 128], sizes = [2, 128], strides = [1, 1]} : vector<2x512xf32> to vector<2x128xf32>
    %215 = arith.negf %214 : vector<2x128xf32>
    %216 = math.exp %215 : vector<2x128xf32>
    %cst_39 = arith.constant 1.000000e+00 : f32
    %217 = vector.broadcast %cst_39 : f32 to vector<2x128xf32>
    %218 = arith.addf %217, %216 : vector<2x128xf32>
    %219 = arith.divf %217, %218 : vector<2x128xf32>
    %220 = vector.extract_strided_slice %207 {offsets = [0, 256], sizes = [2, 128], strides = [1, 1]} : vector<2x512xf32> to vector<2x128xf32>
    %221 = math.tanh %220 : vector<2x128xf32>
    %222 = vector.extract_strided_slice %207 {offsets = [0, 384], sizes = [2, 128], strides = [1, 1]} : vector<2x512xf32> to vector<2x128xf32>
    %223 = arith.negf %222 : vector<2x128xf32>
    %224 = math.exp %223 : vector<2x128xf32>
    %cst_40 = arith.constant 1.000000e+00 : f32
    %225 = vector.broadcast %cst_40 : f32 to vector<2x128xf32>
    %226 = arith.addf %225, %224 : vector<2x128xf32>
    %227 = arith.divf %225, %226 : vector<2x128xf32>
    %228 = arith.mulf %219, %202 : vector<2x128xf32>
    %229 = arith.mulf %213, %221 : vector<2x128xf32>
    %230 = arith.addf %228, %229 : vector<2x128xf32>
    %231 = math.tanh %230 : vector<2x128xf32>
    %232 = arith.mulf %227, %231 : vector<2x128xf32>
    %c0_41 = arith.constant 0 : index
    %c0_42 = arith.constant 0 : index
    %233 = vector.load %arg4[%c0_41, %c0_42] : memref<128x128xf32, #tpu.memory_space<vmem>>, vector<128x128xf32>
    %cst_43 = arith.constant dense<0.000000e+00> : vector<2x128xf32>
    %234 = tpu.matmul %232, %233, %cst_43 {dimension_numbers = #tpu.dot_dimension_numbers<[1], [0], [0], [1], [0, 0, 1, 1], [], []>} : vector<2x128xf32>, vector<128x128xf32>, vector<2x128xf32> -> vector<2x128xf32>
    %c0_44 = arith.constant 0 : index
    %c0_45 = arith.constant 0 : index
    %235 = vector.load %arg5[%c0_44, %c0_45] : memref<1x128xf32, #tpu.memory_space<vmem>>, vector<1x128xf32>
    %236 = vector.broadcast %235 : vector<1x128xf32> to vector<2x128xf32>
    %237 = arith.addf %234, %236 : vector<2x128xf32>
    %238 = arith.negf %237 : vector<2x128xf32>
    %239 = math.exp %238 : vector<2x128xf32>
    %cst_46 = arith.constant 1.000000e+00 : f32
    %240 = vector.broadcast %cst_46 : f32 to vector<2x128xf32>
    %241 = arith.addf %240, %239 : vector<2x128xf32>
    %242 = arith.divf %240, %241 : vector<2x128xf32>
    %c0_47 = arith.constant 0 : index
    %c0_48 = arith.constant 0 : index
    %243 = vector.load %arg6[%c0_47, %c0_48] : memref<2x128xf32, #tpu.memory_space<vmem>>, vector<2x128xf32>
    tpu.vector_store %arg6[%c0_47, %c0_48], %242 {strides = array<i32>} : memref<2x128xf32, #tpu.memory_space<vmem>>, vector<2x128xf32>,
    return
  }
}

</mosaic_0001>

<llo_original>
// kernel: lstm_model_forward.1
$region0: #{lstm_model_forward.1}
  #allocation0 [shape = 'u32[]', space=smem, size = 0x4, offset = 0x4, fixed_abs, tag = 'smem constant byte address 0x4 - core index']
  #allocation1 [shape = 'u32[144,128]{1,0:T(1,128)}', space=vmem, size = 0x12000, scoped, tag = 'internal scratch']
  %s0 = inlined_call_operand.vmem [shape: f32[16,16], index: 0, kind: input, shape index: {}]
  %s1 = inlined_call_operand.vmem [shape: f32[16,512], index: 1, kind: input, shape index: {}]
  %s2 = inlined_call_operand.vmem [shape: f32[128,512], index: 2, kind: input, shape index: {}]
  %s3 = inlined_call_operand.vmem [shape: f32[1,512], index: 3, kind: input, shape index: {}]
  %s4 = inlined_call_operand.vmem [shape: f32[128,128], index: 4, kind: input, shape index: {}]
  %s5 = inlined_call_operand.vmem [shape: f32[1,128], index: 5, kind: input, shape index: {}]
  %s6 = inlined_call_operand.hbm [shape: f32[2,128], index: 6, kind: output, shape index: {}]
  %s7 = sld [smem:[#allocation0]]
  $region34: #{lstm_model_forward.1} parent=0
    _
  %s9 = ssub.s32 1, %s7
  %s10 = scalar_select 0, %s9, %s7
  $region1: #{lstm_model_forward.1} parent=0
    #allocation2 [shape = 'u8[1024]{0}', space=vmem, size = 0x400, scoped, tag = 'output window, operand 0, single buffered']
    #allocation3 [shape = 's32[1]{0}', space=sflag, size = 0x4, scoped, tag = 'scoped memory for lstm_model_forward.1']
    %11 = vsyncpa [#allocation3], 0
    // Predicated region
    $region2: #{lstm_model_forward.1} parent=1 // pred_check
      _
    $region3: #{lstm_model_forward.1} parent=1 // pred_check_branch
      %13 = sbr.rel (0) target = $region5
    $region4: #{lstm_model_forward.1} parent=1 // pred_region
      _
    $region5: #{lstm_model_forward.1} parent=1 // pred_fallthru
      _
    // Predicated region
    $region6: #{lstm_model_forward.1} parent=1 // pred_check
      _
    $region7: #{lstm_model_forward.1} parent=1 // pred_check_branch
      %15 = sbr.rel (0) target = $region9
    $region8: #{lstm_model_forward.1} parent=1 // pred_region
      _
    $region9: #{lstm_model_forward.1} parent=1 // pred_fallthru
      _
    // Predicated region
    $region10: #{lstm_model_forward.1} parent=1 // pred_check
      _
    $region11: #{lstm_model_forward.1} parent=1 // pred_check_branch
      %17 = sbr.rel (0) target = $region13
    $region12: #{lstm_model_forward.1} parent=1 // pred_region
      _
    $region13: #{lstm_model_forward.1} parent=1 // pred_fallthru
      _
    // Predicated region
    $region14: #{lstm_model_forward.1} parent=1 // pred_check
      _
    $region15: #{lstm_model_forward.1} parent=1 // pred_check_branch
      %19 = sbr.rel (0) target = $region17
    $region16: #{lstm_model_forward.1} parent=1 // pred_region
      _
    $region17: #{lstm_model_forward.1} parent=1 // pred_fallthru
      _
    // Predicated region
    $region18: #{lstm_model_forward.1} parent=1 // pred_check
      _
    $region19: #{lstm_model_forward.1} parent=1 // pred_check_branch
      %21 = sbr.rel (0) target = $region21
    $region20: #{lstm_model_forward.1} parent=1 // pred_region
      _
    $region21: #{lstm_model_forward.1} parent=1 // pred_fallthru
      _
    // Predicated region
    $region22: #{lstm_model_forward.1} parent=1 // pred_check
      _
    $region23: #{lstm_model_forward.1} parent=1 // pred_check_branch
      %23 = sbr.rel (0) target = $region25
    $region24: #{lstm_model_forward.1} parent=1 // pred_region
      _
    $region25: #{lstm_model_forward.1} parent=1 // pred_fallthru
      _
    %v24 = vld [vmem:[%s2] sm:$0xff]
    %v25 = vld [vmem:[%s2 + $0x8] sm:$0xff]
    %v26 = vld [vmem:[%s2 + $0x10] sm:$0xff]
    %v27 = vld [vmem:[%s2 + $0x18] sm:$0xff]
    %v28 = vld [vmem:[%s2 + $0x20] sm:$0xff]
    %v29 = vld [vmem:[%s2 + $0x28] sm:$0xff]
    %v30 = vld [vmem:[%s2 + $0x30] sm:$0xff]
    %v31 = vld [vmem:[%s2 + $0x38] sm:$0xff]
    %v32 = vld [vmem:[%s2 + $0x40] sm:$0xff]
    %v33 = vld [vmem:[%s2 + $0x48] sm:$0xff]
    %v34 = vld [vmem:[%s2 + $0x50] sm:$0xff]
    %v35 = vld [vmem:[%s2 + $0x58] sm:$0xff]
    %v36 = vld [vmem:[%s2 + $0x60] sm:$0xff]
    %v37 = vld [vmem:[%s2 + $0x68] sm:$0xff]
    %v38 = vld [vmem:[%s2 + $0x70] sm:$0xff]
    %v39 = vld [vmem:[%s2 + $0x78] sm:$0xff]
    %v40 = vld [vmem:[%s2 + $0x80] sm:$0xff]
    %v41 = vld [vmem:[%s2 + $0x88] sm:$0xff]
    %v42 = vld [vmem:[%s2 + $0x90] sm:$0xff]
    %v43 = vld [vmem:[%s2 + $0x98] sm:$0xff]
    %v44 = vld [vmem:[%s2 + $0xa0] sm:$0xff]
    %v45 = vld [vmem:[%s2 + $0xa8] sm:$0xff]
    %v46 = vld [vmem:[%s2 + $0xb0] sm:$0xff]
    %v47 = vld [vmem:[%s2 + $0xb8] sm:$0xff]
    %v48 = vld [vmem:[%s2 + $0xc0] sm:$0xff]
    %v49 = vld [vmem:[%s2 + $0xc8] sm:$0xff]
    %v50 = vld [vmem:[%s2 + $0xd0] sm:$0xff]
    %v51 = vld [vmem:[%s2 + $0xd8] sm:$0xff]
    %v52 = vld [vmem:[%s2 + $0xe0] sm:$0xff]
    %v53 = vld [vmem:[%s2 + $0xe8] sm:$0xff]
    %v54 = vld [vmem:[%s2 + $0xf0] sm:$0xff]
    %v55 = vld [vmem:[%s2 + $0xf8] sm:$0xff]
    %v56 = vld [vmem:[%s2 + $0x100] sm:$0xff]
    %v57 = vld [vmem:[%s2 + $0x108] sm:$0xff]
    %v58 = vld [vmem:[%s2 + $0x110] sm:$0xff]
    %v59 = vld [vmem:[%s2 + $0x118] sm:$0xff]
    %v60 = vld [vmem:[%s2 + $0x120] sm:$0xff]
    %v61 = vld [vmem:[%s2 + $0x128] sm:$0xff]
    %v62 = vld [vmem:[%s2 + $0x130] sm:$0xff]
    %v63 = vld [vmem:[%s2 + $0x138] sm:$0xff]
    %v64 = vld [vmem:[%s2 + $0x140] sm:$0xff]
    %v65 = vld [vmem:[%s2 + $0x148] sm:$0xff]
    %v66 = vld [vmem:[%s2 + $0x150] sm:$0xff]
    %v67 = vld [vmem:[%s2 + $0x158] sm:$0xff]
    %v68 = vld [vmem:[%s2 + $0x160] sm:$0xff]
    %v69 = vld [vmem:[%s2 + $0x168] sm:$0xff]
    %v70 = vld [vmem:[%s2 + $0x170] sm:$0xff]
    %v71 = vld [vmem:[%s2 + $0x178] sm:$0xff]
    %v72 = vld [vmem:[%s2 + $0x180] sm:$0xff]
    %v73 = vld [vmem:[%s2 + $0x188] sm:$0xff]
    %v74 = vld [vmem:[%s2 + $0x190] sm:$0xff]
    %v75 = vld [vmem:[%s2 + $0x198] sm:$0xff]
    %v76 = vld [vmem:[%s2 + $0x1a0] sm:$0xff]
    %v77 = vld [vmem:[%s2 + $0x1a8] sm:$0xff]
    %v78 = vld [vmem:[%s2 + $0x1b0] sm:$0xff]
    %v79 = vld [vmem:[%s2 + $0x1b8] sm:$0xff]
    %v80 = vld [vmem:[%s2 + $0x1c0] sm:$0xff]
    %v81 = vld [vmem:[%s2 + $0x1c8] sm:$0xff]
    %v82 = vld [vmem:[%s2 + $0x1d0] sm:$0xff]
    %v83 = vld [vmem:[%s2 + $0x1d8] sm:$0xff]
    %v84 = vld [vmem:[%s2 + $0x1e0] sm:$0xff]
    %v85 = vld [vmem:[%s2 + $0x1e8] sm:$0xff]
    %v86 = vld [vmem:[%s2 + $0x1f0] sm:$0xff]
    %v87 = vld [vmem:[%s2 + $0x1f8] sm:$0xff]
    %v88 = vld [vmem:[%s0] sm:$0xff]
    %v89 = vld [vmem:[%s0 + $0x8] sm:$0xff]
    %v90 = vld [vmem:[%s1] sm:$0xff]
    %v91 = vld [vmem:[%s1 + $0x8] sm:$0xff]
    %v92 = vld [vmem:[%s1 + $0x10] sm:$0xff]
    %v93 = vld [vmem:[%s1 + $0x18] sm:$0xff]
    %v94 = vld [vmem:[%s1 + $0x20] sm:$0xff]
    %v95 = vld [vmem:[%s1 + $0x28] sm:$0xff]
    %v96 = vld [vmem:[%s1 + $0x30] sm:$0xff]
    %v97 = vld [vmem:[%s1 + $0x38] sm:$0xff]
    %v98 = vld [vmem:[%s3] sm:$0xf]
    %v100 = vlaneseq
    %v101 = vshrl.u32 %v100, 7
    %v102 = vsub.s32 0, %v101
    %v103 = vrot.slane %v98, %v102
    %v104 = vlaneseq
    %v105 = vshrl.u32 %v104, 7
    %v106 = vsub.s32 1, %v105
    %v107 = vrot.slane %v98, %v106
    %v108 = vlaneseq
    %v109 = vshrl.u32 %v108, 7
    %v110 = vsub.s32 2, %v109
    %v111 = vrot.slane %v98, %v110
    %v112 = vlaneseq
    %v113 = vshrl.u32 %v112, 7
    %v114 = vsub.s32 3, %v113
    %v115 = vrot.slane %v98, %v114
    %vm120 = vcmask 130048
    %v122 = vsel %vm120, %v88, 0
    %v125 = vsel %vm120, %v89, 0
    %127 = vmatprep.subr.mxu0 0.0
    %128 = vmatpush1.msra.mxu0 0.0
    %129 = vmatprep.subr.mxu0 0.0
    %130 = vmatpush1.msra.mxu0 0.0
    %131 = vmatprep.subr.mxu0 0.0
    %132 = vmatpush1.msra.mxu0 0.0
    %133 = vmatprep.subr.mxu0 0.0
    %134 = vmatpush1.msra.mxu0 0.0
    %135 = vmatprep.subr.mxu0 0.0
    %136 = vmatpush1.msra.mxu0 0.0
    %137 = vmatprep.subr.mxu0 0.0
    %138 = vmatpush1.msra.mxu0 0.0
    %139 = vmatprep.subr.mxu0 0.0
    %140 = vmatpush1.msra.mxu0 0.0
    %141 = vmatprep.subr.mxu0 0.0
    %142 = vmatpush1.msra.mxu0 0.0
    %143 = vmatprep.subr.mxu0 0.0
    %144 = vmatpush1.msra.mxu0 0.0
    %145 = vmatprep.subr.mxu0 0.0
    %146 = vmatpush1.msra.mxu0 0.0
    %147 = vmatprep.subr.mxu0 0.0
    %148 = vmatpush1.msra.mxu0 0.0
    %149 = vmatprep.subr.mxu0 0.0
    %150 = vmatpush1.msra.mxu0 0.0
    %151 = vmatprep.subr.mxu0 0.0
    %152 = vmatpush1.msra.mxu0 0.0
    %153 = vmatprep.subr.mxu0 0.0
    %154 = vmatpush1.msra.mxu0 0.0
    %155 = vmatprep.subr.mxu0 %v95
    %156 = vmatpush1.msra.mxu0 %v94
    %157 = vmatprep.subr.mxu0 %v91
    %158 = vmatpush1.msra.mxu0 %v90
    %159 = vmatprep.subr.mxu0 0.0
    %160 = vmatpush2.msra.mxu0 0.0
    %161 = vmatprep.subr.mxu0 0.0
    %162 = vmatpush2.msra.mxu0 0.0
    %163 = vmatprep.subr.mxu0 0.0
    %164 = vmatpush2.msra.mxu0 0.0
    %165 = vmatprep.subr.mxu0 0.0
    %166 = vmatpush2.msra.mxu0 0.0
    %167 = vmatprep.subr.mxu0 0.0
    %168 = vmatpush2.msra.mxu0 0.0
    %169 = vmatprep.subr.mxu0 0.0
    %170 = vmatpush2.msra.mxu0 0.0
    %171 = vmatprep.subr.mxu0 0.0
    %172 = vmatpush2.msra.mxu0 0.0
    %173 = vmatprep.subr.mxu0 0.0
    %174 = vmatpush2.msra.mxu0 0.0
    %175 = vmatprep.subr.mxu0 0.0
    %176 = vmatpush2.msra.mxu0 0.0
    %177 = vmatprep.subr.mxu0 0.0
    %178 = vmatpush2.msra.mxu0 0.0
    %179 = vmatprep.subr.mxu0 0.0
    %180 = vmatpush2.msra.mxu0 0.0
    %181 = vmatprep.subr.mxu0 0.0
    %182 = vmatpush2.msra.mxu0 0.0
    %183 = vmatprep.subr.mxu0 0.0
    %184 = vmatpush2.msra.mxu0 0.0
    %185 = vmatprep.subr.mxu0 0.0
    %186 = vmatpush2.msra.mxu0 0.0
    %187 = vmatprep.subr.mxu0 0.0
    %188 = vmatpush2.msra.mxu0 0.0
    %189 = vmatprep.subr.mxu0 0.0
    %190 = vmatpush2.msra.mxu0 0.0
    %191 = vmatprep.mubr.f32.mxu0 0.0
    %192 = vmatmul.mubr.f32.gmra.mxu0 %v122
    %v193 = vpop.f32.mrf.mxu0
    %v194 = vadd.f32 %v103, %v193
    %v195 = vpop.f32.mrf.mxu0
    %v196 = vadd.f32 %v107, %v195
    %197 = vmatprep.mubr.f32.mxu0 0.0
    %198 = vmatmul.mubr.f32.gmra.mxu0 %v125
    %v199 = vpop.f32.mrf.mxu0
    %v200 = vadd.f32 %v103, %v199
    %v201 = vpop.f32.mrf.mxu0
    %v202 = vadd.f32 %v107, %v201
    %203 = vdwg.mxu0
    %204 = vmatprep.subr.mxu0 0.0
    %205 = vmatpush1.msra.mxu0 0.0
    %206 = vmatprep.subr.mxu0 0.0
    %207 = vmatpush1.msra.mxu0 0.0
    %208 = vmatprep.subr.mxu0 0.0
    %209 = vmatpush1.msra.mxu0 0.0
    %210 = vmatprep.subr.mxu0 0.0
    %211 = vmatpush1.msra.mxu0 0.0
    %212 = vmatprep.subr.mxu0 0.0
    %213 = vmatpush1.msra.mxu0 0.0
    %214 = vmatprep.subr.mxu0 0.0
    %215 = vmatpush1.msra.mxu0 0.0
    %216 = vmatprep.subr.mxu0 0.0
    %217 = vmatpush1.msra.mxu0 0.0
    %218 = vmatprep.subr.mxu0 0.0
    %219 = vmatpush1.msra.mxu0 0.0
    %220 = vmatprep.subr.mxu0 0.0
    %221 = vmatpush1.msra.mxu0 0.0
    %222 = vmatprep.subr.mxu0 0.0
    %223 = vmatpush1.msra.mxu0 0.0
    %224 = vmatprep.subr.mxu0 0.0
    %225 = vmatpush1.msra.mxu0 0.0
    %226 = vmatprep.subr.mxu0 0.0
    %227 = vmatpush1.msra.mxu0 0.0
    %228 = vmatprep.subr.mxu0 0.0
    %229 = vmatpush1.msra.mxu0 0.0
    %230 = vmatprep.subr.mxu0 0.0
    %231 = vmatpush1.msra.mxu0 0.0
    %232 = vmatprep.subr.mxu0 %v97
    %233 = vmatpush1.msra.mxu0 %v96
    %234 = vmatprep.subr.mxu0 %v93
    %235 = vmatpush1.msra.mxu0 %v92
    %236 = vmatprep.subr.mxu0 0.0
    %237 = vmatpush2.msra.mxu0 0.0
    %238 = vmatprep.subr.mxu0 0.0
    %239 = vmatpush2.msra.mxu0 0.0
    %240 = vmatprep.subr.mxu0 0.0
    %241 = vmatpush2.msra.mxu0 0.0
    %242 = vmatprep.subr.mxu0 0.0
    %243 = vmatpush2.msra.mxu0 0.0
    %244 = vmatprep.subr.mxu0 0.0
    %245 = vmatpush2.msra.mxu0 0.0
    %246 = vmatprep.subr.mxu0 0.0
    %247 = vmatpush2.msra.mxu0 0.0
    %248 = vmatprep.subr.mxu0 0.0
    %249 = vmatpush2.msra.mxu0 0.0
    %250 = vmatprep.subr.mxu0 0.0
    %251 = vmatpush2.msra.mxu0 0.0
    %252 = vmatprep.subr.mxu0 0.0
    %253 = vmatpush2.msra.mxu0 0.0
    %254 = vmatprep.subr.mxu0 0.0
    %255 = vmatpush2.msra.mxu0 0.0
    %256 = vmatprep.subr.mxu0 0.0
    %257 = vmatpush2.msra.mxu0 0.0
    %258 = vmatprep.subr.mxu0 0.0
    %259 = vmatpush2.msra.mxu0 0.0
    %260 = vmatprep.subr.mxu0 0.0
    %261 = vmatpush2.msra.mxu0 0.0
    %262 = vmatprep.subr.mxu0 0.0
    %263 = vmatpush2.msra.mxu0 0.0
    %264 = vmatprep.subr.mxu0 0.0
    %265 = vmatpush2.msra.mxu0 0.0
    %266 = vmatprep.subr.mxu0 0.0
    %267 = vmatpush2.msra.mxu0 0.0
    %268 = vmatprep.mubr.f32.mxu0 0.0
    %269 = vmatmul.mubr.f32.gmra.mxu0 %v122
    %v270 = vpop.f32.mrf.mxu0
    %v271 = vadd.f32 %v111, %v270
    %v272 = vpop.f32.mrf.mxu0
    %v273 = vadd.f32 %v115, %v272
    %274 = vmatprep.mubr.f32.mxu0 0.0
    %275 = vmatmul.mubr.f32.gmra.mxu0 %v125
    %v276 = vpop.f32.mrf.mxu0
    %v277 = vadd.f32 %v111, %v276
    %v278 = vpop.f32.mrf.mxu0
    %v279 = vadd.f32 %v115, %v278
    %280 = vdwg.mxu0
    %281 = vmatprep.subr.mxu0 %v85
    %282 = vmatpush1.msra.mxu0 %v84
    %283 = vmatprep.subr.mxu0 %v81
    %284 = vmatpush1.msra.mxu0 %v80
    %285 = vmatprep.subr.mxu0 %v77
    %286 = vmatpush1.msra.mxu0 %v76
    %287 = vmatprep.subr.mxu0 %v73
    %288 = vmatpush1.msra.mxu0 %v72
    %289 = vmatprep.subr.mxu0 %v69
    %290 = vmatpush1.msra.mxu0 %v68
    %291 = vmatprep.subr.mxu0 %v65
    %292 = vmatpush1.msra.mxu0 %v64
    %293 = vmatprep.subr.mxu0 %v61
    %294 = vmatpush1.msra.mxu0 %v60
    %295 = vmatprep.subr.mxu0 %v57
    %296 = vmatpush1.msra.mxu0 %v56
    %297 = vmatprep.subr.mxu0 %v53
    %298 = vmatpush1.msra.mxu0 %v52
    %299 = vmatprep.subr.mxu0 %v49
    %300 = vmatpush1.msra.mxu0 %v48
    %301 = vmatprep.subr.mxu0 %v45
    %302 = vmatpush1.msra.mxu0 %v44
    %303 = vmatprep.subr.mxu0 %v41
    %304 = vmatpush1.msra.mxu0 %v40
    %305 = vmatprep.subr.mxu0 %v37
    %306 = vmatpush1.msra.mxu0 %v36
    %307 = vmatprep.subr.mxu0 %v33
    %308 = vmatpush1.msra.mxu0 %v32
    %309 = vmatprep.subr.mxu0 %v29
    %310 = vmatpush1.msra.mxu0 %v28
    %311 = vmatprep.subr.mxu0 %v25
    %312 = vmatpush1.msra.mxu0 %v24
    %313 = vmatprep.subr.mxu0 0.0
    %314 = vmatpush2.msra.mxu0 0.0
    %315 = vmatprep.subr.mxu0 0.0
    %316 = vmatpush2.msra.mxu0 0.0
    %317 = vmatprep.subr.mxu0 0.0
    %318 = vmatpush2.msra.mxu0 0.0
    %319 = vmatprep.subr.mxu0 0.0
    %320 = vmatpush2.msra.mxu0 0.0
    %321 = vmatprep.subr.mxu0 0.0
    %322 = vmatpush2.msra.mxu0 0.0
    %323 = vmatprep.subr.mxu0 0.0
    %324 = vmatpush2.msra.mxu0 0.0
    %325 = vmatprep.subr.mxu0 0.0
    %326 = vmatpush2.msra.mxu0 0.0
    %327 = vmatprep.subr.mxu0 0.0
    %328 = vmatpush2.msra.mxu0 0.0
    %329 = vmatprep.subr.mxu0 0.0
    %330 = vmatpush2.msra.mxu0 0.0
    %331 = vmatprep.subr.mxu0 0.0
    %332 = vmatpush2.msra.mxu0 0.0
    %333 = vmatprep.subr.mxu0 0.0
    %334 = vmatpush2.msra.mxu0 0.0
    %335 = vmatprep.subr.mxu0 0.0
    %336 = vmatpush2.msra.mxu0 0.0
    %337 = vmatprep.subr.mxu0 0.0
    %338 = vmatpush2.msra.mxu0 0.0
    %339 = vmatprep.subr.mxu0 0.0
    %340 = vmatpush2.msra.mxu0 0.0
    %341 = vmatprep.subr.mxu0 0.0
    %342 = vmatpush2.msra.mxu0 0.0
    %343 = vmatprep.subr.mxu0 0.0
    %344 = vmatpush2.msra.mxu0 0.0
    %345 = vmatprep.mubr.f32.mxu0 0.0
    %346 = vmatmul.mubr.f32.gmra.mxu0 0.0
    %v347 = vpop.f32.mrf.mxu0
    %v348 = vadd.f32 0.0, %v347
    %v349 = vpop.f32.mrf.mxu0
    %v350 = vadd.f32 0.0, %v349
    %351 = vdwg.mxu0
    %352 = vmatprep.subr.mxu0 %v87
    %353 = vmatpush1.msra.mxu0 %v86
    %354 = vmatprep.subr.mxu0 %v83
    %355 = vmatpush1.msra.mxu0 %v82
    %356 = vmatprep.subr.mxu0 %v79
    %357 = vmatpush1.msra.mxu0 %v78
    %358 = vmatprep.subr.mxu0 %v75
    %359 = vmatpush1.msra.mxu0 %v74
    %360 = vmatprep.subr.mxu0 %v71
    %361 = vmatpush1.msra.mxu0 %v70
    %362 = vmatprep.subr.mxu0 %v67
    %363 = vmatpush1.msra.mxu0 %v66
    %364 = vmatprep.subr.mxu0 %v63
    %365 = vmatpush1.msra.mxu0 %v62
    %366 = vmatprep.subr.mxu0 %v59
    %367 = vmatpush1.msra.mxu0 %v58
    %368 = vmatprep.subr.mxu0 %v55
    %369 = vmatpush1.msra.mxu0 %v54
    %370 = vmatprep.subr.mxu0 %v51
    %371 = vmatpush1.msra.mxu0 %v50
    %372 = vmatprep.subr.mxu0 %v47
    %373 = vmatpush1.msra.mxu0 %v46
    %374 = vmatprep.subr.mxu0 %v43
    %375 = vmatpush1.msra.mxu0 %v42
    %376 = vmatprep.subr.mxu0 %v39
    %377 = vmatpush1.msra.mxu0 %v38
    %378 = vmatprep.subr.mxu0 %v35
    %379 = vmatpush1.msra.mxu0 %v34
    %380 = vmatprep.subr.mxu0 %v31
    %381 = vmatpush1.msra.mxu0 %v30
    %382 = vmatprep.subr.mxu0 %v27
    %383 = vmatpush1.msra.mxu0 %v26
    %384 = vmatprep.subr.mxu0 0.0
    %385 = vmatpush2.msra.mxu0 0.0
    %386 = vmatprep.subr.mxu0 0.0
    %387 = vmatpush2.msra.mxu0 0.0
    %388 = vmatprep.subr.mxu0 0.0
    %389 = vmatpush2.msra.mxu0 0.0
    %390 = vmatprep.subr.mxu0 0.0
    %391 = vmatpush2.msra.mxu0 0.0
    %392 = vmatprep.subr.mxu0 0.0
    %393 = vmatpush2.msra.mxu0 0.0
    %394 = vmatprep.subr.mxu0 0.0
    %395 = vmatpush2.msra.mxu0 0.0
    %396 = vmatprep.subr.mxu0 0.0
    %397 = vmatpush2.msra.mxu0 0.0
    %398 = vmatprep.subr.mxu0 0.0
    %399 = vmatpush2.msra.mxu0 0.0
    %400 = vmatprep.subr.mxu0 0.0
    %401 = vmatpush2.msra.mxu0 0.0
    %402 = vmatprep.subr.mxu0 0.0
    %403 = vmatpush2.msra.mxu0 0.0
    %404 = vmatprep.subr.mxu0 0.0
    %405 = vmatpush2.msra.mxu0 0.0
    %406 = vmatprep.subr.mxu0 0.0
    %407 = vmatpush2.msra.mxu0 0.0
    %408 = vmatprep.subr.mxu0 0.0
    %409 = vmatpush2.msra.mxu0 0.0
    %410 = vmatprep.subr.mxu0 0.0
    %411 = vmatpush2.msra.mxu0 0.0
    %412 = vmatprep.subr.mxu0 0.0
    %413 = vmatpush2.msra.mxu0 0.0
    %414 = vmatprep.subr.mxu0 0.0
    %415 = vmatpush2.msra.mxu0 0.0
    %416 = vmatprep.mubr.f32.mxu0 0.0
    %417 = vmatmul.mubr.f32.gmra.mxu0 0.0
    %v418 = vpop.f32.mrf.mxu0
    %v419 = vadd.f32 0.0, %v418
    %v420 = vpop.f32.mrf.mxu0
    %v421 = vadd.f32 0.0, %v420
    %422 = vdwg.mxu0
    %v423 = vadd.f32 %v194, %v348
    %v424 = vadd.f32 %v196, %v350
    %v425 = vadd.f32 %v271, %v419
    %v426 = vadd.f32 %v273, %v421
    %v427 = vxor.u32 %v423, 2147483648
    %v428 = vmul.f32 %v427, 1.442695
    %v429 = vpow.pop %v428
    %v430 = vadd.f32 %v429, 1.0
    %v431 = vrcp.pop %v430
    %v432 = vmul.f32 1.0, %v431
    %v433 = vxor.u32 %v424, 2147483648
    %v434 = vmul.f32 %v433, 1.442695
    %v435 = vpow.pop %v434
    %v436 = vadd.f32 %v435, 1.0
    %v437 = vrcp.pop %v436
    %v438 = vmul.f32 1.0, %v437
    %v439 = vtanh.pop %v425
    %v440 = vxor.u32 %v426, 2147483648
    %v441 = vmul.f32 %v440, 1.442695
    %v442 = vpow.pop %v441
    %v443 = vadd.f32 %v442, 1.0
    %v444 = vrcp.pop %v443
    %v445 = vmul.f32 1.0, %v444
    %v446 = vmul.f32 %v438, 0.0
    %v447 = vmul.f32 %v432, %v439
    %v448 = vadd.f32 %v446, %v447
    %v449 = vtanh.pop %v448
    %v450 = vmul.f32 %v445, %v449
    %451 = vmatprep.subr.mxu0 %v85
    %452 = vmatpush1.msra.mxu0 %v84
    %453 = vmatprep.subr.mxu0 %v81
    %454 = vmatpush1.msra.mxu0 %v80
    %455 = vmatprep.subr.mxu0 %v77
    %456 = vmatpush1.msra.mxu0 %v76
    %457 = vmatprep.subr.mxu0 %v73
    %458 = vmatpush1.msra.mxu0 %v72
    %459 = vmatprep.subr.mxu0 %v69
    %460 = vmatpush1.msra.mxu0 %v68
    %461 = vmatprep.subr.mxu0 %v65
    %462 = vmatpush1.msra.mxu0 %v64
    %463 = vmatprep.subr.mxu0 %v61
    %464 = vmatpush1.msra.mxu0 %v60
    %465 = vmatprep.subr.mxu0 %v57
    %466 = vmatpush1.msra.mxu0 %v56
    %467 = vmatprep.subr.mxu0 %v53
    %468 = vmatpush1.msra.mxu0 %v52
    %469 = vmatprep.subr.mxu0 %v49
    %470 = vmatpush1.msra.mxu0 %v48
    %471 = vmatprep.subr.mxu0 %v45
    %472 = vmatpush1.msra.mxu0 %v44
    %473 = vmatprep.subr.mxu0 %v41
    %474 = vmatpush1.msra.mxu0 %v40
    %475 = vmatprep.subr.mxu0 %v37
    %476 = vmatpush1.msra.mxu0 %v36
    %477 = vmatprep.subr.mxu0 %v33
    %478 = vmatpush1.msra.mxu0 %v32
    %479 = vmatprep.subr.mxu0 %v29
    %480 = vmatpush1.msra.mxu0 %v28
    %481 = vmatprep.subr.mxu0 %v25
    %482 = vmatpush1.msra.mxu0 %v24
    %483 = vmatprep.subr.mxu0 0.0
    %484 = vmatpush2.msra.mxu0 0.0
    %485 = vmatprep.subr.mxu0 0.0
    %486 = vmatpush2.msra.mxu0 0.0
    %487 = vmatprep.subr.mxu0 0.0
    %488 = vmatpush2.msra.mxu0 0.0
    %489 = vmatprep.subr.mxu0 0.0
    %490 = vmatpush2.msra.mxu0 0.0
    %491 = vmatprep.subr.mxu0 0.0
    %492 = vmatpush2.msra.mxu0 0.0
    %493 = vmatprep.subr.mxu0 0.0
    %494 = vmatpush2.msra.mxu0 0.0
    %495 = vmatprep.subr.mxu0 0.0
    %496 = vmatpush2.msra.mxu0 0.0
    %497 = vmatprep.subr.mxu0 0.0
    %498 = vmatpush2.msra.mxu0 0.0
    %499 = vmatprep.subr.mxu0 0.0
    %500 = vmatpush2.msra.mxu0 0.0
    %501 = vmatprep.subr.mxu0 0.0
    %502 = vmatpush2.msra.mxu0 0.0
    %503 = vmatprep.subr.mxu0 0.0
    %504 = vmatpush2.msra.mxu0 0.0
    %505 = vmatprep.subr.mxu0 0.0
    %506 = vmatpush2.msra.mxu0 0.0
    %507 = vmatprep.subr.mxu0 0.0
    %508 = vmatpush2.msra.mxu0 0.0
    %509 = vmatprep.subr.mxu0 0.0
    %510 = vmatpush2.msra.mxu0 0.0
    %511 = vmatprep.subr.mxu0 0.0
    %512 = vmatpush2.msra.mxu0 0.0
    %513 = vmatprep.subr.mxu0 0.0
    %514 = vmatpush2.msra.mxu0 0.0
    %515 = vmatprep.mubr.f32.mxu0 0.0
    %516 = vmatmul.mubr.f32.gmra.mxu0 %v450
    %v517 = vpop.f32.mrf.mxu0
    %v518 = vadd.f32 0.0, %v517
    %v519 = vpop.f32.mrf.mxu0
    %v520 = vadd.f32 0.0, %v519
    %521 = vdwg.mxu0
    %522 = vmatprep.subr.mxu0 %v87
    %523 = vmatpush1.msra.mxu0 %v86
    %524 = vmatprep.subr.mxu0 %v83
    %525 = vmatpush1.msra.mxu0 %v82
    %526 = vmatprep.subr.mxu0 %v79
    %527 = vmatpush1.msra.mxu0 %v78
    %528 = vmatprep.subr.mxu0 %v75
    %529 = vmatpush1.msra.mxu0 %v74
    %530 = vmatprep.subr.mxu0 %v71
    %531 = vmatpush1.msra.mxu0 %v70
    %532 = vmatprep.subr.mxu0 %v67
    %533 = vmatpush1.msra.mxu0 %v66
    %534 = vmatprep.subr.mxu0 %v63
    %535 = vmatpush1.msra.mxu0 %v62
    %536 = vmatprep.subr.mxu0 %v59
    %537 = vmatpush1.msra.mxu0 %v58
    %538 = vmatprep.subr.mxu0 %v55
    %539 = vmatpush1.msra.mxu0 %v54
    %540 = vmatprep.subr.mxu0 %v51
    %541 = vmatpush1.msra.mxu0 %v50
    %542 = vmatprep.subr.mxu0 %v47
    %543 = vmatpush1.msra.mxu0 %v46
    %544 = vmatprep.subr.mxu0 %v43
    %545 = vmatpush1.msra.mxu0 %v42
    %546 = vmatprep.subr.mxu0 %v39
    %547 = vmatpush1.msra.mxu0 %v38
    %548 = vmatprep.subr.mxu0 %v35
    %549 = vmatpush1.msra.mxu0 %v34
    %550 = vmatprep.subr.mxu0 %v31
    %551 = vmatpush1.msra.mxu0 %v30
    %552 = vmatprep.subr.mxu0 %v27
    %553 = vmatpush1.msra.mxu0 %v26
    %554 = vmatprep.subr.mxu0 0.0
    %555 = vmatpush2.msra.mxu0 0.0
    %556 = vmatprep.subr.mxu0 0.0
    %557 = vmatpush2.msra.mxu0 0.0
    %558 = vmatprep.subr.mxu0 0.0
    %559 = vmatpush2.msra.mxu0 0.0
    %560 = vmatprep.subr.mxu0 0.0
    %561 = vmatpush2.msra.mxu0 0.0
    %562 = vmatprep.subr.mxu0 0.0
    %563 = vmatpush2.msra.mxu0 0.0
    %564 = vmatprep.subr.mxu0 0.0
    %565 = vmatpush2.msra.mxu0 0.0
    %566 = vmatprep.subr.mxu0 0.0
    %567 = vmatpush2.msra.mxu0 0.0
    %568 = vmatprep.subr.mxu0 0.0
    %569 = vmatpush2.msra.mxu0 0.0
    %570 = vmatprep.subr.mxu0 0.0
    %571 = vmatpush2.msra.mxu0 0.0
    %572 = vmatprep.subr.mxu0 0.0
    %573 = vmatpush2.msra.mxu0 0.0
    %574 = vmatprep.subr.mxu0 0.0
    %575 = vmatpush2.msra.mxu0 0.0
    %576 = vmatprep.subr.mxu0 0.0
    %577 = vmatpush2.msra.mxu0 0.0
    %578 = vmatprep.subr.mxu0 0.0
    %579 = vmatpush2.msra.mxu0 0.0
    %580 = vmatprep.subr.mxu0 0.0
    %581 = vmatpush2.msra.mxu0 0.0
    %582 = vmatprep.subr.mxu0 0.0
    %583 = vmatpush2.msra.mxu0 0.0
    %584 = vmatprep.subr.mxu0 0.0
    %585 = vmatpush2.msra.mxu0 0.0
    %586 = vmatprep.mubr.f32.mxu0 0.0
    %587 = vmatmul.mubr.f32.gmra.mxu0 %v450
    %v588 = vpop.f32.mrf.mxu0
    %v589 = vadd.f32 0.0, %v588
    %v590 = vpop.f32.mrf.mxu0
    %v591 = vadd.f32 0.0, %v590
    %592 = vdwg.mxu0
    %v597 = vrot.slane %v518, 6
    %v598 = vrot.slane %v520, 6
    %v599 = vrot.slane %v589, 6
    %v600 = vrot.slane %v591, 6
    %v605 = vadd.f32 %v194, %v597
    %v606 = vadd.f32 %v196, %v598
    %v607 = vadd.f32 %v271, %v599
    %v608 = vadd.f32 %v273, %v600
    %v609 = vxor.u32 %v605, 2147483648
    %v610 = vmul.f32 %v609, 1.442695
    %v611 = vpow.pop %v610
    %v612 = vadd.f32 %v611, 1.0
    %v613 = vrcp.pop %v612
    %v614 = vmul.f32 1.0, %v613
    %v615 = vxor.u32 %v606, 2147483648
    %v616 = vmul.f32 %v615, 1.442695
    %v617 = vpow.pop %v616
    %v618 = vadd.f32 %v617, 1.0
    %v619 = vrcp.pop %v618
    %v620 = vmul.f32 1.0, %v619
    %v621 = vtanh.pop %v607
    %v622 = vxor.u32 %v608, 2147483648
    %v623 = vmul.f32 %v622, 1.442695
    %v624 = vpow.pop %v623
    %v625 = vadd.f32 %v624, 1.0
    %v626 = vrcp.pop %v625
    %v627 = vmul.f32 1.0, %v626
    %v629 = vrot.slane %v448, 6
    %v631 = vmul.f32 %v620, %v629
    %v632 = vmul.f32 %v614, %v621
    %v633 = vadd.f32 %v631, %v632
    %v634 = vtanh.pop %v633
    %v635 = vmul.f32 %v627, %v634
    %v637 = vrot.slane %v635, 2
    %639 = vmatprep.subr.mxu0 %v85
    %640 = vmatpush1.msra.mxu0 %v84
    %641 = vmatprep.subr.mxu0 %v81
    %642 = vmatpush1.msra.mxu0 %v80
    %643 = vmatprep.subr.mxu0 %v77
    %644 = vmatpush1.msra.mxu0 %v76
    %645 = vmatprep.subr.mxu0 %v73
    %646 = vmatpush1.msra.mxu0 %v72
    %647 = vmatprep.subr.mxu0 %v69
    %648 = vmatpush1.msra.mxu0 %v68
    %649 = vmatprep.subr.mxu0 %v65
    %650 = vmatpush1.msra.mxu0 %v64
    %651 = vmatprep.subr.mxu0 %v61
    %652 = vmatpush1.msra.mxu0 %v60
    %653 = vmatprep.subr.mxu0 %v57
    %654 = vmatpush1.msra.mxu0 %v56
    %655 = vmatprep.subr.mxu0 %v53
    %656 = vmatpush1.msra.mxu0 %v52
    %657 = vmatprep.subr.mxu0 %v49
    %658 = vmatpush1.msra.mxu0 %v48
    %659 = vmatprep.subr.mxu0 %v45
    %660 = vmatpush1.msra.mxu0 %v44
    %661 = vmatprep.subr.mxu0 %v41
    %662 = vmatpush1.msra.mxu0 %v40
    %663 = vmatprep.subr.mxu0 %v37
    %664 = vmatpush1.msra.mxu0 %v36
    %665 = vmatprep.subr.mxu0 %v33
    %666 = vmatpush1.msra.mxu0 %v32
    %667 = vmatprep.subr.mxu0 %v29
    %668 = vmatpush1.msra.mxu0 %v28
    %669 = vmatprep.subr.mxu0 %v25
    %670 = vmatpush1.msra.mxu0 %v24
    %671 = vmatprep.subr.mxu0 0.0
    %672 = vmatpush2.msra.mxu0 0.0
    %673 = vmatprep.subr.mxu0 0.0
    %674 = vmatpush2.msra.mxu0 0.0
    %675 = vmatprep.subr.mxu0 0.0
    %676 = vmatpush2.msra.mxu0 0.0
    %677 = vmatprep.subr.mxu0 0.0
    %678 = vmatpush2.msra.mxu0 0.0
    %679 = vmatprep.subr.mxu0 0.0
    %680 = vmatpush2.msra.mxu0 0.0
    %681 = vmatprep.subr.mxu0 0.0
    %682 = vmatpush2.msra.mxu0 0.0
    %683 = vmatprep.subr.mxu0 0.0
    %684 = vmatpush2.msra.mxu0 0.0
    %685 = vmatprep.subr.mxu0 0.0
    %686 = vmatpush2.msra.mxu0 0.0
    %687 = vmatprep.subr.mxu0 0.0
    %688 = vmatpush2.msra.mxu0 0.0
    %689 = vmatprep.subr.mxu0 0.0
    %690 = vmatpush2.msra.mxu0 0.0
    %691 = vmatprep.subr.mxu0 0.0
    %692 = vmatpush2.msra.mxu0 0.0
    %693 = vmatprep.subr.mxu0 0.0
    %694 = vmatpush2.msra.mxu0 0.0
    %695 = vmatprep.subr.mxu0 0.0
    %696 = vmatpush2.msra.mxu0 0.0
    %697 = vmatprep.subr.mxu0 0.0
    %698 = vmatpush2.msra.mxu0 0.0
    %699 = vmatprep.subr.mxu0 0.0
    %700 = vmatpush2.msra.mxu0 0.0
    %701 = vmatprep.subr.mxu0 0.0
    %702 = vmatpush2.msra.mxu0 0.0
    %703 = vmatprep.mubr.f32.mxu0 0.0
    %704 = vmatmul.mubr.f32.gmra.mxu0 %v637
    %v705 = vpop.f32.mrf.mxu0
    %v706 = vadd.f32 0.0, %v705
    %v707 = vpop.f32.mrf.mxu0
    %v708 = vadd.f32 0.0, %v707
    %709 = vdwg.mxu0
    %710 = vmatprep.subr.mxu0 %v87
    %711 = vmatpush1.msra.mxu0 %v86
    %712 = vmatprep.subr.mxu0 %v83
    %713 = vmatpush1.msra.mxu0 %v82
    %714 = vmatprep.subr.mxu0 %v79
    %715 = vmatpush1.msra.mxu0 %v78
    %716 = vmatprep.subr.mxu0 %v75
    %717 = vmatpush1.msra.mxu0 %v74
    %718 = vmatprep.subr.mxu0 %v71
    %719 = vmatpush1.msra.mxu0 %v70
    %720 = vmatprep.subr.mxu0 %v67
    %721 = vmatpush1.msra.mxu0 %v66
    %722 = vmatprep.subr.mxu0 %v63
    %723 = vmatpush1.msra.mxu0 %v62
    %724 = vmatprep.subr.mxu0 %v59
    %725 = vmatpush1.msra.mxu0 %v58
    %726 = vmatprep.subr.mxu0 %v55
    %727 = vmatpush1.msra.mxu0 %v54
    %728 = vmatprep.subr.mxu0 %v51
    %729 = vmatpush1.msra.mxu0 %v50
    %730 = vmatprep.subr.mxu0 %v47
    %731 = vmatpush1.msra.mxu0 %v46
    %732 = vmatprep.subr.mxu0 %v43
    %733 = vmatpush1.msra.mxu0 %v42
    %734 = vmatprep.subr.mxu0 %v39
    %735 = vmatpush1.msra.mxu0 %v38
    %736 = vmatprep.subr.mxu0 %v35
    %737 = vmatpush1.msra.mxu0 %v34
    %738 = vmatprep.subr.mxu0 %v31
    %739 = vmatpush1.msra.mxu0 %v30
    %740 = vmatprep.subr.mxu0 %v27
    %741 = vmatpush1.msra.mxu0 %v26
    %742 = vmatprep.subr.mxu0 0.0
    %743 = vmatpush2.msra.mxu0 0.0
    %744 = vmatprep.subr.mxu0 0.0
    %745 = vmatpush2.msra.mxu0 0.0
    %746 = vmatprep.subr.mxu0 0.0
    %747 = vmatpush2.msra.mxu0 0.0
    %748 = vmatprep.subr.mxu0 0.0
    %749 = vmatpush2.msra.mxu0 0.0
    %750 = vmatprep.subr.mxu0 0.0
    %751 = vmatpush2.msra.mxu0 0.0
    %752 = vmatprep.subr.mxu0 0.0
    %753 = vmatpush2.msra.mxu0 0.0
    %754 = vmatprep.subr.mxu0 0.0
    %755 = vmatpush2.msra.mxu0 0.0
    %756 = vmatprep.subr.mxu0 0.0
    %757 = vmatpush2.msra.mxu0 0.0
    %758 = vmatprep.subr.mxu0 0.0
    %759 = vmatpush2.msra.mxu0 0.0
    %760 = vmatprep.subr.mxu0 0.0
    %761 = vmatpush2.msra.mxu0 0.0
    %762 = vmatprep.subr.mxu0 0.0
    %763 = vmatpush2.msra.mxu0 0.0
    %764 = vmatprep.subr.mxu0 0.0
    %765 = vmatpush2.msra.mxu0 0.0
    %766 = vmatprep.subr.mxu0 0.0
    %767 = vmatpush2.msra.mxu0 0.0
    %768 = vmatprep.subr.mxu0 0.0
    %769 = vmatpush2.msra.mxu0 0.0
    %770 = vmatprep.subr.mxu0 0.0
    %771 = vmatpush2.msra.mxu0 0.0
    %772 = vmatprep.subr.mxu0 0.0
    %773 = vmatpush2.msra.mxu0 0.0
    %774 = vmatprep.mubr.f32.mxu0 0.0
    %775 = vmatmul.mubr.f32.gmra.mxu0 %v637
    %v776 = vpop.f32.mrf.mxu0
    %v777 = vadd.f32 0.0, %v776
    %v778 = vpop.f32.mrf.mxu0
    %v779 = vadd.f32 0.0, %v778
    %780 = vdwg.mxu0
    %v785 = vrot.slane %v706, 4
    %v786 = vrot.slane %v708, 4
    %v787 = vrot.slane %v777, 4
    %v788 = vrot.slane %v779, 4
    %v793 = vadd.f32 %v194, %v785
    %v794 = vadd.f32 %v196, %v786
    %v795 = vadd.f32 %v271, %v787
    %v796 = vadd.f32 %v273, %v788
    %v797 = vxor.u32 %v793, 2147483648
    %v798 = vmul.f32 %v797, 1.442695
    %v799 = vpow.pop %v798
    %v800 = vadd.f32 %v799, 1.0
    %v801 = vrcp.pop %v800
    %v802 = vmul.f32 1.0, %v801
    %v803 = vxor.u32 %v794, 2147483648
    %v804 = vmul.f32 %v803, 1.442695
    %v805 = vpow.pop %v804
    %v806 = vadd.f32 %v805, 1.0
    %v807 = vrcp.pop %v806
    %v808 = vmul.f32 1.0, %v807
    %v809 = vtanh.pop %v795
    %v810 = vxor.u32 %v796, 2147483648
    %v811 = vmul.f32 %v810, 1.442695
    %v812 = vpow.pop %v811
    %v813 = vadd.f32 %v812, 1.0
    %v814 = vrcp.pop %v813
    %v815 = vmul.f32 1.0, %v814
    %v817 = vrot.slane %v633, 6
    %v819 = vmul.f32 %v808, %v817
    %v820 = vmul.f32 %v802, %v809
    %v821 = vadd.f32 %v819, %v820
    %v822 = vtanh.pop %v821
    %v823 = vmul.f32 %v815, %v822
    %v825 = vrot.slane %v823, 4
    %827 = vmatprep.subr.mxu0 %v85
    %828 = vmatpush1.msra.mxu0 %v84
    %829 = vmatprep.subr.mxu0 %v81
    %830 = vmatpush1.msra.mxu0 %v80
    %831 = vmatprep.subr.mxu0 %v77
    %832 = vmatpush1.msra.mxu0 %v76
    %833 = vmatprep.subr.mxu0 %v73
    %834 = vmatpush1.msra.mxu0 %v72
    %835 = vmatprep.subr.mxu0 %v69
    %836 = vmatpush1.msra.mxu0 %v68
    %837 = vmatprep.subr.mxu0 %v65
    %838 = vmatpush1.msra.mxu0 %v64
    %839 = vmatprep.subr.mxu0 %v61
    %840 = vmatpush1.msra.mxu0 %v60
    %841 = vmatprep.subr.mxu0 %v57
    %842 = vmatpush1.msra.mxu0 %v56
    %843 = vmatprep.subr.mxu0 %v53
    %844 = vmatpush1.msra.mxu0 %v52
    %845 = vmatprep.subr.mxu0 %v49
    %846 = vmatpush1.msra.mxu0 %v48
    %847 = vmatprep.subr.mxu0 %v45
    %848 = vmatpush1.msra.mxu0 %v44
    %849 = vmatprep.subr.mxu0 %v41
    %850 = vmatpush1.msra.mxu0 %v40
    %851 = vmatprep.subr.mxu0 %v37
    %852 = vmatpush1.msra.mxu0 %v36
    %853 = vmatprep.subr.mxu0 %v33
    %854 = vmatpush1.msra.mxu0 %v32
    %855 = vmatprep.subr.mxu0 %v29
    %856 = vmatpush1.msra.mxu0 %v28
    %857 = vmatprep.subr.mxu0 %v25
    %858 = vmatpush1.msra.mxu0 %v24
    %859 = vmatprep.subr.mxu0 0.0
    %860 = vmatpush2.msra.mxu0 0.0
    %861 = vmatprep.subr.mxu0 0.0
    %862 = vmatpush2.msra.mxu0 0.0
    %863 = vmatprep.subr.mxu0 0.0
    %864 = vmatpush2.msra.mxu0 0.0
    %865 = vmatprep.subr.mxu0 0.0
    %866 = vmatpush2.msra.mxu0 0.0
    %867 = vmatprep.subr.mxu0 0.0
    %868 = vmatpush2.msra.mxu0 0.0
    %869 = vmatprep.subr.mxu0 0.0
    %870 = vmatpush2.msra.mxu0 0.0
    %871 = vmatprep.subr.mxu0 0.0
    %872 = vmatpush2.msra.mxu0 0.0
    %873 = vmatprep.subr.mxu0 0.0
    %874 = vmatpush2.msra.mxu0 0.0
    %875 = vmatprep.subr.mxu0 0.0
    %876 = vmatpush2.msra.mxu0 0.0
    %877 = vmatprep.subr.mxu0 0.0
    %878 = vmatpush2.msra.mxu0 0.0
    %879 = vmatprep.subr.mxu0 0.0
    %880 = vmatpush2.msra.mxu0 0.0
    %881 = vmatprep.subr.mxu0 0.0
    %882 = vmatpush2.msra.mxu0 0.0
    %883 = vmatprep.subr.mxu0 0.0
    %884 = vmatpush2.msra.mxu0 0.0
    %885 = vmatprep.subr.mxu0 0.0
    %886 = vmatpush2.msra.mxu0 0.0
    %887 = vmatprep.subr.mxu0 0.0
    %888 = vmatpush2.msra.mxu0 0.0
    %889 = vmatprep.subr.mxu0 0.0
    %890 = vmatpush2.msra.mxu0 0.0
    %891 = vmatprep.mubr.f32.mxu0 0.0
    %892 = vmatmul.mubr.f32.gmra.mxu0 %v825
    %v893 = vpop.f32.mrf.mxu0
    %v894 = vadd.f32 0.0, %v893
    %v895 = vpop.f32.mrf.mxu0
    %v896 = vadd.f32 0.0, %v895
    %897 = vdwg.mxu0
    %898 = vmatprep.subr.mxu0 %v87
    %899 = vmatpush1.msra.mxu0 %v86
    %900 = vmatprep.subr.mxu0 %v83
    %901 = vmatpush1.msra.mxu0 %v82
    %902 = vmatprep.subr.mxu0 %v79
    %903 = vmatpush1.msra.mxu0 %v78
    %904 = vmatprep.subr.mxu0 %v75
    %905 = vmatpush1.msra.mxu0 %v74
    %906 = vmatprep.subr.mxu0 %v71
    %907 = vmatpush1.msra.mxu0 %v70
    %908 = vmatprep.subr.mxu0 %v67
    %909 = vmatpush1.msra.mxu0 %v66
    %910 = vmatprep.subr.mxu0 %v63
    %911 = vmatpush1.msra.mxu0 %v62
    %912 = vmatprep.subr.mxu0 %v59
    %913 = vmatpush1.msra.mxu0 %v58
    %914 = vmatprep.subr.mxu0 %v55
    %915 = vmatpush1.msra.mxu0 %v54
    %916 = vmatprep.subr.mxu0 %v51
    %917 = vmatpush1.msra.mxu0 %v50
    %918 = vmatprep.subr.mxu0 %v47
    %919 = vmatpush1.msra.mxu0 %v46
    %920 = vmatprep.subr.mxu0 %v43
    %921 = vmatpush1.msra.mxu0 %v42
    %922 = vmatprep.subr.mxu0 %v39
    %923 = vmatpush1.msra.mxu0 %v38
    %924 = vmatprep.subr.mxu0 %v35
    %925 = vmatpush1.msra.mxu0 %v34
    %926 = vmatprep.subr.mxu0 %v31
    %927 = vmatpush1.msra.mxu0 %v30
    %928 = vmatprep.subr.mxu0 %v27
    %929 = vmatpush1.msra.mxu0 %v26
    %930 = vmatprep.subr.mxu0 0.0
    %931 = vmatpush2.msra.mxu0 0.0
    %932 = vmatprep.subr.mxu0 0.0
    %933 = vmatpush2.msra.mxu0 0.0
    %934 = vmatprep.subr.mxu0 0.0
    %935 = vmatpush2.msra.mxu0 0.0
    %936 = vmatprep.subr.mxu0 0.0
    %937 = vmatpush2.msra.mxu0 0.0
    %938 = vmatprep.subr.mxu0 0.0
    %939 = vmatpush2.msra.mxu0 0.0
    %940 = vmatprep.subr.mxu0 0.0
    %941 = vmatpush2.msra.mxu0 0.0
    %942 = vmatprep.subr.mxu0 0.0
    %943 = vmatpush2.msra.mxu0 0.0
    %944 = vmatprep.subr.mxu0 0.0
    %945 = vmatpush2.msra.mxu0 0.0
    %946 = vmatprep.subr.mxu0 0.0
    %947 = vmatpush2.msra.mxu0 0.0
    %948 = vmatprep.subr.mxu0 0.0
    %949 = vmatpush2.msra.mxu0 0.0
    %950 = vmatprep.subr.mxu0 0.0
    %951 = vmatpush2.msra.mxu0 0.0
    %952 = vmatprep.subr.mxu0 0.0
    %953 = vmatpush2.msra.mxu0 0.0
    %954 = vmatprep.subr.mxu0 0.0
    %955 = vmatpush2.msra.mxu0 0.0
    %956 = vmatprep.subr.mxu0 0.0
    %957 = vmatpush2.msra.mxu0 0.0
    %958 = vmatprep.subr.mxu0 0.0
    %959 = vmatpush2.msra.mxu0 0.0
    %960 = vmatprep.subr.mxu0 0.0
    %961 = vmatpush2.msra.mxu0 0.0
    %962 = vmatprep.mubr.f32.mxu0 0.0
    %963 = vmatmul.mubr.f32.gmra.mxu0 %v825
    %v964 = vpop.f32.mrf.mxu0
    %v965 = vadd.f32 0.0, %v964
    %v966 = vpop.f32.mrf.mxu0
    %v967 = vadd.f32 0.0, %v966
    %968 = vdwg.mxu0
    %v973 = vrot.slane %v894, 2
    %v974 = vrot.slane %v896, 2
    %v975 = vrot.slane %v965, 2
    %v976 = vrot.slane %v967, 2
    %v981 = vadd.f32 %v194, %v973
    %v982 = vadd.f32 %v196, %v974
    %v983 = vadd.f32 %v271, %v975
    %v984 = vadd.f32 %v273, %v976
    %v985 = vxor.u32 %v981, 2147483648
    %v986 = vmul.f32 %v985, 1.442695
    %v987 = vpow.pop %v986
    %v988 = vadd.f32 %v987, 1.0
    %v989 = vrcp.pop %v988
    %v990 = vmul.f32 1.0, %v989
    %v991 = vxor.u32 %v982, 2147483648
    %v992 = vmul.f32 %v991, 1.442695
    %v993 = vpow.pop %v992
    %v994 = vadd.f32 %v993, 1.0
    %v995 = vrcp.pop %v994
    %v996 = vmul.f32 1.0, %v995
    %v997 = vtanh.pop %v983
    %v998 = vxor.u32 %v984, 2147483648
    %v999 = vmul.f32 %v998, 1.442695
    %v1000 = vpow.pop %v999
    %v1001 = vadd.f32 %v1000, 1.0
    %v1002 = vrcp.pop %v1001
    %v1003 = vmul.f32 1.0, %v1002
    %v1005 = vrot.slane %v821, 6
    %v1007 = vmul.f32 %v996, %v1005
    %v1008 = vmul.f32 %v990, %v997
    %v1009 = vadd.f32 %v1007, %v1008
    %v1010 = vtanh.pop %v1009
    %v1011 = vmul.f32 %v1003, %v1010
    %v1013 = vrot.slane %v1011, 6
    %1015 = vmatprep.subr.mxu0 %v85
    %1016 = vmatpush1.msra.mxu0 %v84
    %1017 = vmatprep.subr.mxu0 %v81
    %1018 = vmatpush1.msra.mxu0 %v80
    %1019 = vmatprep.subr.mxu0 %v77
    %1020 = vmatpush1.msra.mxu0 %v76
    %1021 = vmatprep.subr.mxu0 %v73
    %1022 = vmatpush1.msra.mxu0 %v72
    %1023 = vmatprep.subr.mxu0 %v69
    %1024 = vmatpush1.msra.mxu0 %v68
    %1025 = vmatprep.subr.mxu0 %v65
    %1026 = vmatpush1.msra.mxu0 %v64
    %1027 = vmatprep.subr.mxu0 %v61
    %1028 = vmatpush1.msra.mxu0 %v60
    %1029 = vmatprep.subr.mxu0 %v57
    %1030 = vmatpush1.msra.mxu0 %v56
    %1031 = vmatprep.subr.mxu0 %v53
    %1032 = vmatpush1.msra.mxu0 %v52
    %1033 = vmatprep.subr.mxu0 %v49
    %1034 = vmatpush1.msra.mxu0 %v48
    %1035 = vmatprep.subr.mxu0 %v45
    %1036 = vmatpush1.msra.mxu0 %v44
    %1037 = vmatprep.subr.mxu0 %v41
    %1038 = vmatpush1.msra.mxu0 %v40
    %1039 = vmatprep.subr.mxu0 %v37
    %1040 = vmatpush1.msra.mxu0 %v36
    %1041 = vmatprep.subr.mxu0 %v33
    %1042 = vmatpush1.msra.mxu0 %v32
    %1043 = vmatprep.subr.mxu0 %v29
    %1044 = vmatpush1.msra.mxu0 %v28
    %1045 = vmatprep.subr.mxu0 %v25
    %1046 = vmatpush1.msra.mxu0 %v24
    %1047 = vmatprep.subr.mxu0 0.0
    %1048 = vmatpush2.msra.mxu0 0.0
    %1049 = vmatprep.subr.mxu0 0.0
    %1050 = vmatpush2.msra.mxu0 0.0
    %1051 = vmatprep.subr.mxu0 0.0
    %1052 = vmatpush2.msra.mxu0 0.0
    %1053 = vmatprep.subr.mxu0 0.0
    %1054 = vmatpush2.msra.mxu0 0.0
    %1055 = vmatprep.subr.mxu0 0.0
    %1056 = vmatpush2.msra.mxu0 0.0
    %1057 = vmatprep.subr.mxu0 0.0
    %1058 = vmatpush2.msra.mxu0 0.0
    %1059 = vmatprep.subr.mxu0 0.0
    %1060 = vmatpush2.msra.mxu0 0.0
    %1061 = vmatprep.subr.mxu0 0.0
    %1062 = vmatpush2.msra.mxu0 0.0
    %1063 = vmatprep.subr.mxu0 0.0
    %1064 = vmatpush2.msra.mxu0 0.0
    %1065 = vmatprep.subr.mxu0 0.0
    %1066 = vmatpush2.msra.mxu0 0.0
    %1067 = vmatprep.subr.mxu0 0.0
    %1068 = vmatpush2.msra.mxu0 0.0
    %1069 = vmatprep.subr.mxu0 0.0
    %1070 = vmatpush2.msra.mxu0 0.0
    %1071 = vmatprep.subr.mxu0 0.0
    %1072 = vmatpush2.msra.mxu0 0.0
    %1073 = vmatprep.subr.mxu0 0.0
    %1074 = vmatpush2.msra.mxu0 0.0
    %1075 = vmatprep.subr.mxu0 0.0
    %1076 = vmatpush2.msra.mxu0 0.0
    %1077 = vmatprep.subr.mxu0 0.0
    %1078 = vmatpush2.msra.mxu0 0.0
    %1079 = vmatprep.mubr.f32.mxu0 0.0
    %1080 = vmatmul.mubr.f32.gmra.mxu0 %v1013
    %v1081 = vpop.f32.mrf.mxu0
    %v1082 = vadd.f32 0.0, %v1081
    %v1083 = vpop.f32.mrf.mxu0
    %v1084 = vadd.f32 0.0, %v1083
    %1085 = vdwg.mxu0
    %1086 = vmatprep.subr.mxu0 %v87
    %1087 = vmatpush1.msra.mxu0 %v86
    %1088 = vmatprep.subr.mxu0 %v83
    %1089 = vmatpush1.msra.mxu0 %v82
    %1090 = vmatprep.subr.mxu0 %v79
    %1091 = vmatpush1.msra.mxu0 %v78
    %1092 = vmatprep.subr.mxu0 %v75
    %1093 = vmatpush1.msra.mxu0 %v74
    %1094 = vmatprep.subr.mxu0 %v71
    %1095 = vmatpush1.msra.mxu0 %v70
    %1096 = vmatprep.subr.mxu0 %v67
    %1097 = vmatpush1.msra.mxu0 %v66
    %1098 = vmatprep.subr.mxu0 %v63
    %1099 = vmatpush1.msra.mxu0 %v62
    %1100 = vmatprep.subr.mxu0 %v59
    %1101 = vmatpush1.msra.mxu0 %v58
    %1102 = vmatprep.subr.mxu0 %v55
    %1103 = vmatpush1.msra.mxu0 %v54
    %1104 = vmatprep.subr.mxu0 %v51
    %1105 = vmatpush1.msra.mxu0 %v50
    %1106 = vmatprep.subr.mxu0 %v47
    %1107 = vmatpush1.msra.mxu0 %v46
    %1108 = vmatprep.subr.mxu0 %v43
    %1109 = vmatpush1.msra.mxu0 %v42
    %1110 = vmatprep.subr.mxu0 %v39
    %1111 = vmatpush1.msra.mxu0 %v38
    %1112 = vmatprep.subr.mxu0 %v35
    %1113 = vmatpush1.msra.mxu0 %v34
    %1114 = vmatprep.subr.mxu0 %v31
    %1115 = vmatpush1.msra.mxu0 %v30
    %1116 = vmatprep.subr.mxu0 %v27
    %1117 = vmatpush1.msra.mxu0 %v26
    %1118 = vmatprep.subr.mxu0 0.0
    %1119 = vmatpush2.msra.mxu0 0.0
    %1120 = vmatprep.subr.mxu0 0.0
    %1121 = vmatpush2.msra.mxu0 0.0
    %1122 = vmatprep.subr.mxu0 0.0
    %1123 = vmatpush2.msra.mxu0 0.0
    %1124 = vmatprep.subr.mxu0 0.0
    %1125 = vmatpush2.msra.mxu0 0.0
    %1126 = vmatprep.subr.mxu0 0.0
    %1127 = vmatpush2.msra.mxu0 0.0
    %1128 = vmatprep.subr.mxu0 0.0
    %1129 = vmatpush2.msra.mxu0 0.0
    %1130 = vmatprep.subr.mxu0 0.0
    %1131 = vmatpush2.msra.mxu0 0.0
    %1132 = vmatprep.subr.mxu0 0.0
    %1133 = vmatpush2.msra.mxu0 0.0
    %1134 = vmatprep.subr.mxu0 0.0
    %1135 = vmatpush2.msra.mxu0 0.0
    %1136 = vmatprep.subr.mxu0 0.0
    %1137 = vmatpush2.msra.mxu0 0.0
    %1138 = vmatprep.subr.mxu0 0.0
    %1139 = vmatpush2.msra.mxu0 0.0
    %1140 = vmatprep.subr.mxu0 0.0
    %1141 = vmatpush2.msra.mxu0 0.0
    %1142 = vmatprep.subr.mxu0 0.0
    %1143 = vmatpush2.msra.mxu0 0.0
    %1144 = vmatprep.subr.mxu0 0.0
    %1145 = vmatpush2.msra.mxu0 0.0
    %1146 = vmatprep.subr.mxu0 0.0
    %1147 = vmatpush2.msra.mxu0 0.0
    %1148 = vmatprep.subr.mxu0 0.0
    %1149 = vmatpush2.msra.mxu0 0.0
    %1150 = vmatprep.mubr.f32.mxu0 0.0
    %1151 = vmatmul.mubr.f32.gmra.mxu0 %v1013
    %v1152 = vpop.f32.mrf.mxu0
    %v1153 = vadd.f32 0.0, %v1152
    %v1154 = vpop.f32.mrf.mxu0
    %v1155 = vadd.f32 0.0, %v1154
    %1156 = vdwg.mxu0
    %v1157 = vadd.f32 %v200, %v1082
    %v1158 = vadd.f32 %v202, %v1084
    %v1159 = vadd.f32 %v277, %v1153
    %v1160 = vadd.f32 %v279, %v1155
    %v1161 = vxor.u32 %v1157, 2147483648
    %v1162 = vmul.f32 %v1161, 1.442695
    %v1163 = vpow.pop %v1162
    %v1164 = vadd.f32 %v1163, 1.0
    %v1165 = vrcp.pop %v1164
    %v1166 = vmul.f32 1.0, %v1165
    %v1167 = vxor.u32 %v1158, 2147483648
    %v1168 = vmul.f32 %v1167, 1.442695
    %v1169 = vpow.pop %v1168
    %v1170 = vadd.f32 %v1169, 1.0
    %v1171 = vrcp.pop %v1170
    %v1172 = vmul.f32 1.0, %v1171
    %v1173 = vtanh.pop %v1159
    %v1174 = vxor.u32 %v1160, 2147483648
    %v1175 = vmul.f32 %v1174, 1.442695
    %v1176 = vpow.pop %v1175
    %v1177 = vadd.f32 %v1176, 1.0
    %v1178 = vrcp.pop %v1177
    %v1179 = vmul.f32 1.0, %v1178
    %v1181 = vrot.slane %v1009, 6
    %v1183 = vmul.f32 %v1172, %v1181
    %v1184 = vmul.f32 %v1166, %v1173
    %v1185 = vadd.f32 %v1183, %v1184
    %v1186 = vtanh.pop %v1185
    %v1187 = vmul.f32 %v1179, %v1186
    %1188 = vmatprep.subr.mxu0 %v85
    %1189 = vmatpush1.msra.mxu0 %v84
    %1190 = vmatprep.subr.mxu0 %v81
    %1191 = vmatpush1.msra.mxu0 %v80
    %1192 = vmatprep.subr.mxu0 %v77
    %1193 = vmatpush1.msra.mxu0 %v76
    %1194 = vmatprep.subr.mxu0 %v73
    %1195 = vmatpush1.msra.mxu0 %v72
    %1196 = vmatprep.subr.mxu0 %v69
    %1197 = vmatpush1.msra.mxu0 %v68
    %1198 = vmatprep.subr.mxu0 %v65
    %1199 = vmatpush1.msra.mxu0 %v64
    %1200 = vmatprep.subr.mxu0 %v61
    %1201 = vmatpush1.msra.mxu0 %v60
    %1202 = vmatprep.subr.mxu0 %v57
    %1203 = vmatpush1.msra.mxu0 %v56
    %1204 = vmatprep.subr.mxu0 %v53
    %1205 = vmatpush1.msra.mxu0 %v52
    %1206 = vmatprep.subr.mxu0 %v49
    %1207 = vmatpush1.msra.mxu0 %v48
    %1208 = vmatprep.subr.mxu0 %v45
    %1209 = vmatpush1.msra.mxu0 %v44
    %1210 = vmatprep.subr.mxu0 %v41
    %1211 = vmatpush1.msra.mxu0 %v40
    %1212 = vmatprep.subr.mxu0 %v37
    %1213 = vmatpush1.msra.mxu0 %v36
    %1214 = vmatprep.subr.mxu0 %v33
    %1215 = vmatpush1.msra.mxu0 %v32
    %1216 = vmatprep.subr.mxu0 %v29
    %1217 = vmatpush1.msra.mxu0 %v28
    %1218 = vmatprep.subr.mxu0 %v25
    %1219 = vmatpush1.msra.mxu0 %v24
    %1220 = vmatprep.subr.mxu0 0.0
    %1221 = vmatpush2.msra.mxu0 0.0
    %1222 = vmatprep.subr.mxu0 0.0
    %1223 = vmatpush2.msra.mxu0 0.0
    %1224 = vmatprep.subr.mxu0 0.0
    %1225 = vmatpush2.msra.mxu0 0.0
    %1226 = vmatprep.subr.mxu0 0.0
    %1227 = vmatpush2.msra.mxu0 0.0
    %1228 = vmatprep.subr.mxu0 0.0
    %1229 = vmatpush2.msra.mxu0 0.0
    %1230 = vmatprep.subr.mxu0 0.0
    %1231 = vmatpush2.msra.mxu0 0.0
    %1232 = vmatprep.subr.mxu0 0.0
    %1233 = vmatpush2.msra.mxu0 0.0
    %1234 = vmatprep.subr.mxu0 0.0
    %1235 = vmatpush2.msra.mxu0 0.0
    %1236 = vmatprep.subr.mxu0 0.0
    %1237 = vmatpush2.msra.mxu0 0.0
    %1238 = vmatprep.subr.mxu0 0.0
    %1239 = vmatpush2.msra.mxu0 0.0
    %1240 = vmatprep.subr.mxu0 0.0
    %1241 = vmatpush2.msra.mxu0 0.0
    %1242 = vmatprep.subr.mxu0 0.0
    %1243 = vmatpush2.msra.mxu0 0.0
    %1244 = vmatprep.subr.mxu0 0.0
    %1245 = vmatpush2.msra.mxu0 0.0
    %1246 = vmatprep.subr.mxu0 0.0
    %1247 = vmatpush2.msra.mxu0 0.0
    %1248 = vmatprep.subr.mxu0 0.0
    %1249 = vmatpush2.msra.mxu0 0.0
    %1250 = vmatprep.subr.mxu0 0.0
    %1251 = vmatpush2.msra.mxu0 0.0
    %1252 = vmatprep.mubr.f32.mxu0 0.0
    %1253 = vmatmul.mubr.f32.gmra.mxu0 %v1187
    %v1254 = vpop.f32.mrf.mxu0
    %v1255 = vadd.f32 0.0, %v1254
    %v1256 = vpop.f32.mrf.mxu0
    %v1257 = vadd.f32 0.0, %v1256
    %1258 = vdwg.mxu0
    %1259 = vmatprep.subr.mxu0 %v87
    %1260 = vmatpush1.msra.mxu0 %v86
    %1261 = vmatprep.subr.mxu0 %v83
    %1262 = vmatpush1.msra.mxu0 %v82
    %1263 = vmatprep.subr.mxu0 %v79
    %1264 = vmatpush1.msra.mxu0 %v78
    %1265 = vmatprep.subr.mxu0 %v75
    %1266 = vmatpush1.msra.mxu0 %v74
    %1267 = vmatprep.subr.mxu0 %v71
    %1268 = vmatpush1.msra.mxu0 %v70
    %1269 = vmatprep.subr.mxu0 %v67
    %1270 = vmatpush1.msra.mxu0 %v66
    %1271 = vmatprep.subr.mxu0 %v63
    %1272 = vmatpush1.msra.mxu0 %v62
    %1273 = vmatprep.subr.mxu0 %v59
    %1274 = vmatpush1.msra.mxu0 %v58
    %1275 = vmatprep.subr.mxu0 %v55
    %1276 = vmatpush1.msra.mxu0 %v54
    %1277 = vmatprep.subr.mxu0 %v51
    %1278 = vmatpush1.msra.mxu0 %v50
    %1279 = vmatprep.subr.mxu0 %v47
    %1280 = vmatpush1.msra.mxu0 %v46
    %1281 = vmatprep.subr.mxu0 %v43
    %1282 = vmatpush1.msra.mxu0 %v42
    %1283 = vmatprep.subr.mxu0 %v39
    %1284 = vmatpush1.msra.mxu0 %v38
    %1285 = vmatprep.subr.mxu0 %v35
    %1286 = vmatpush1.msra.mxu0 %v34
    %1287 = vmatprep.subr.mxu0 %v31
    %1288 = vmatpush1.msra.mxu0 %v30
    %1289 = vmatprep.subr.mxu0 %v27
    %1290 = vmatpush1.msra.mxu0 %v26
    %1291 = vmatprep.subr.mxu0 0.0
    %1292 = vmatpush2.msra.mxu0 0.0
    %1293 = vmatprep.subr.mxu0 0.0
    %1294 = vmatpush2.msra.mxu0 0.0
    %1295 = vmatprep.subr.mxu0 0.0
    %1296 = vmatpush2.msra.mxu0 0.0
    %1297 = vmatprep.subr.mxu0 0.0
    %1298 = vmatpush2.msra.mxu0 0.0
    %1299 = vmatprep.subr.mxu0 0.0
    %1300 = vmatpush2.msra.mxu0 0.0
    %1301 = vmatprep.subr.mxu0 0.0
    %1302 = vmatpush2.msra.mxu0 0.0
    %1303 = vmatprep.subr.mxu0 0.0
    %1304 = vmatpush2.msra.mxu0 0.0
    %1305 = vmatprep.subr.mxu0 0.0
    %1306 = vmatpush2.msra.mxu0 0.0
    %1307 = vmatprep.subr.mxu0 0.0
    %1308 = vmatpush2.msra.mxu0 0.0
    %1309 = vmatprep.subr.mxu0 0.0
    %1310 = vmatpush2.msra.mxu0 0.0
    %1311 = vmatprep.subr.mxu0 0.0
    %1312 = vmatpush2.msra.mxu0 0.0
    %1313 = vmatprep.subr.mxu0 0.0
    %1314 = vmatpush2.msra.mxu0 0.0
    %1315 = vmatprep.subr.mxu0 0.0
    %1316 = vmatpush2.msra.mxu0 0.0
    %1317 = vmatprep.subr.mxu0 0.0
    %1318 = vmatpush2.msra.mxu0 0.0
    %1319 = vmatprep.subr.mxu0 0.0
    %1320 = vmatpush2.msra.mxu0 0.0
    %1321 = vmatprep.subr.mxu0 0.0
    %1322 = vmatpush2.msra.mxu0 0.0
    %1323 = vmatprep.mubr.f32.mxu0 0.0
    %1324 = vmatmul.mubr.f32.gmra.mxu0 %v1187
    %v1325 = vpop.f32.mrf.mxu0
    %v1326 = vadd.f32 0.0, %v1325
    %v1327 = vpop.f32.mrf.mxu0
    %v1328 = vadd.f32 0.0, %v1327
    %1329 = vdwg.mxu0
    %v1334 = vrot.slane %v1255, 6
    %v1335 = vrot.slane %v1257, 6
    %v1336 = vrot.slane %v1326, 6
    %v1337 = vrot.slane %v1328, 6
    %v1342 = vadd.f32 %v200, %v1334
    %v1343 = vadd.f32 %v202, %v1335
    %v1344 = vadd.f32 %v277, %v1336
    %v1345 = vadd.f32 %v279, %v1337
    %v1346 = vxor.u32 %v1342, 2147483648
    %v1347 = vmul.f32 %v1346, 1.442695
    %v1348 = vpow.pop %v1347
    %v1349 = vadd.f32 %v1348, 1.0
    %v1350 = vrcp.pop %v1349
    %v1351 = vmul.f32 1.0, %v1350
    %v1352 = vxor.u32 %v1343, 2147483648
    %v1353 = vmul.f32 %v1352, 1.442695
    %v1354 = vpow.pop %v1353
    %v1355 = vadd.f32 %v1354, 1.0
    %v1356 = vrcp.pop %v1355
    %v1357 = vmul.f32 1.0, %v1356
    %v1358 = vtanh.pop %v1344
    %v1359 = vxor.u32 %v1345, 2147483648
    %v1360 = vmul.f32 %v1359, 1.442695
    %v1361 = vpow.pop %v1360
    %v1362 = vadd.f32 %v1361, 1.0
    %v1363 = vrcp.pop %v1362
    %v1364 = vmul.f32 1.0, %v1363
    %v1366 = vrot.slane %v1185, 6
    %v1368 = vmul.f32 %v1357, %v1366
    %v1369 = vmul.f32 %v1351, %v1358
    %v1370 = vadd.f32 %v1368, %v1369
    %v1371 = vtanh.pop %v1370
    %v1372 = vmul.f32 %v1364, %v1371
    %v1374 = vrot.slane %v1372, 2
    %1376 = vmatprep.subr.mxu0 %v85
    %1377 = vmatpush1.msra.mxu0 %v84
    %1378 = vmatprep.subr.mxu0 %v81
    %1379 = vmatpush1.msra.mxu0 %v80
    %1380 = vmatprep.subr.mxu0 %v77
    %1381 = vmatpush1.msra.mxu0 %v76
    %1382 = vmatprep.subr.mxu0 %v73
    %1383 = vmatpush1.msra.mxu0 %v72
    %1384 = vmatprep.subr.mxu0 %v69
    %1385 = vmatpush1.msra.mxu0 %v68
    %1386 = vmatprep.subr.mxu0 %v65
    %1387 = vmatpush1.msra.mxu0 %v64
    %1388 = vmatprep.subr.mxu0 %v61
    %1389 = vmatpush1.msra.mxu0 %v60
    %1390 = vmatprep.subr.mxu0 %v57
    %1391 = vmatpush1.msra.mxu0 %v56
    %1392 = vmatprep.subr.mxu0 %v53
    %1393 = vmatpush1.msra.mxu0 %v52
    %1394 = vmatprep.subr.mxu0 %v49
    %1395 = vmatpush1.msra.mxu0 %v48
    %1396 = vmatprep.subr.mxu0 %v45
    %1397 = vmatpush1.msra.mxu0 %v44
    %1398 = vmatprep.subr.mxu0 %v41
    %1399 = vmatpush1.msra.mxu0 %v40
    %1400 = vmatprep.subr.mxu0 %v37
    %1401 = vmatpush1.msra.mxu0 %v36
    %1402 = vmatprep.subr.mxu0 %v33
    %1403 = vmatpush1.msra.mxu0 %v32
    %1404 = vmatprep.subr.mxu0 %v29
    %1405 = vmatpush1.msra.mxu0 %v28
    %1406 = vmatprep.subr.mxu0 %v25
    %1407 = vmatpush1.msra.mxu0 %v24
    %1408 = vmatprep.subr.mxu0 0.0
    %1409 = vmatpush2.msra.mxu0 0.0
    %1410 = vmatprep.subr.mxu0 0.0
    %1411 = vmatpush2.msra.mxu0 0.0
    %1412 = vmatprep.subr.mxu0 0.0
    %1413 = vmatpush2.msra.mxu0 0.0
    %1414 = vmatprep.subr.mxu0 0.0
    %1415 = vmatpush2.msra.mxu0 0.0
    %1416 = vmatprep.subr.mxu0 0.0
    %1417 = vmatpush2.msra.mxu0 0.0
    %1418 = vmatprep.subr.mxu0 0.0
    %1419 = vmatpush2.msra.mxu0 0.0
    %1420 = vmatprep.subr.mxu0 0.0
    %1421 = vmatpush2.msra.mxu0 0.0
    %1422 = vmatprep.subr.mxu0 0.0
    %1423 = vmatpush2.msra.mxu0 0.0
    %1424 = vmatprep.subr.mxu0 0.0
    %1425 = vmatpush2.msra.mxu0 0.0
    %1426 = vmatprep.subr.mxu0 0.0
    %1427 = vmatpush2.msra.mxu0 0.0
    %1428 = vmatprep.subr.mxu0 0.0
    %1429 = vmatpush2.msra.mxu0 0.0
    %1430 = vmatprep.subr.mxu0 0.0
    %1431 = vmatpush2.msra.mxu0 0.0
    %1432 = vmatprep.subr.mxu0 0.0
    %1433 = vmatpush2.msra.mxu0 0.0
    %1434 = vmatprep.subr.mxu0 0.0
    %1435 = vmatpush2.msra.mxu0 0.0
    %1436 = vmatprep.subr.mxu0 0.0
    %1437 = vmatpush2.msra.mxu0 0.0
    %1438 = vmatprep.subr.mxu0 0.0
    %1439 = vmatpush2.msra.mxu0 0.0
    %1440 = vmatprep.mubr.f32.mxu0 0.0
    %1441 = vmatmul.mubr.f32.gmra.mxu0 %v1374
    %v1442 = vpop.f32.mrf.mxu0
    %v1443 = vadd.f32 0.0, %v1442
    %v1444 = vpop.f32.mrf.mxu0
    %v1445 = vadd.f32 0.0, %v1444
    %1446 = vdwg.mxu0
    %1447 = vmatprep.subr.mxu0 %v87
    %1448 = vmatpush1.msra.mxu0 %v86
    %1449 = vmatprep.subr.mxu0 %v83
    %1450 = vmatpush1.msra.mxu0 %v82
    %1451 = vmatprep.subr.mxu0 %v79
    %1452 = vmatpush1.msra.mxu0 %v78
    %1453 = vmatprep.subr.mxu0 %v75
    %1454 = vmatpush1.msra.mxu0 %v74
    %1455 = vmatprep.subr.mxu0 %v71
    %1456 = vmatpush1.msra.mxu0 %v70
    %1457 = vmatprep.subr.mxu0 %v67
    %1458 = vmatpush1.msra.mxu0 %v66
    %1459 = vmatprep.subr.mxu0 %v63
    %1460 = vmatpush1.msra.mxu0 %v62
    %1461 = vmatprep.subr.mxu0 %v59
    %1462 = vmatpush1.msra.mxu0 %v58
    %1463 = vmatprep.subr.mxu0 %v55
    %1464 = vmatpush1.msra.mxu0 %v54
    %1465 = vmatprep.subr.mxu0 %v51
    %1466 = vmatpush1.msra.mxu0 %v50
    %1467 = vmatprep.subr.mxu0 %v47
    %1468 = vmatpush1.msra.mxu0 %v46
    %1469 = vmatprep.subr.mxu0 %v43
    %1470 = vmatpush1.msra.mxu0 %v42
    %1471 = vmatprep.subr.mxu0 %v39
    %1472 = vmatpush1.msra.mxu0 %v38
    %1473 = vmatprep.subr.mxu0 %v35
    %1474 = vmatpush1.msra.mxu0 %v34
    %1475 = vmatprep.subr.mxu0 %v31
    %1476 = vmatpush1.msra.mxu0 %v30
    %1477 = vmatprep.subr.mxu0 %v27
    %1478 = vmatpush1.msra.mxu0 %v26
    %1479 = vmatprep.subr.mxu0 0.0
    %1480 = vmatpush2.msra.mxu0 0.0
    %1481 = vmatprep.subr.mxu0 0.0
    %1482 = vmatpush2.msra.mxu0 0.0
    %1483 = vmatprep.subr.mxu0 0.0
    %1484 = vmatpush2.msra.mxu0 0.0
    %1485 = vmatprep.subr.mxu0 0.0
    %1486 = vmatpush2.msra.mxu0 0.0
    %1487 = vmatprep.subr.mxu0 0.0
    %1488 = vmatpush2.msra.mxu0 0.0
    %1489 = vmatprep.subr.mxu0 0.0
    %1490 = vmatpush2.msra.mxu0 0.0
    %1491 = vmatprep.subr.mxu0 0.0
    %1492 = vmatpush2.msra.mxu0 0.0
    %1493 = vmatprep.subr.mxu0 0.0
    %1494 = vmatpush2.msra.mxu0 0.0
    %1495 = vmatprep.subr.mxu0 0.0
    %1496 = vmatpush2.msra.mxu0 0.0
    %1497 = vmatprep.subr.mxu0 0.0
    %1498 = vmatpush2.msra.mxu0 0.0
    %1499 = vmatprep.subr.mxu0 0.0
    %1500 = vmatpush2.msra.mxu0 0.0
    %1501 = vmatprep.subr.mxu0 0.0
    %1502 = vmatpush2.msra.mxu0 0.0
    %1503 = vmatprep.subr.mxu0 0.0
    %1504 = vmatpush2.msra.mxu0 0.0
    %1505 = vmatprep.subr.mxu0 0.0
    %1506 = vmatpush2.msra.mxu0 0.0
    %1507 = vmatprep.subr.mxu0 0.0
    %1508 = vmatpush2.msra.mxu0 0.0
    %1509 = vmatprep.subr.mxu0 0.0
    %1510 = vmatpush2.msra.mxu0 0.0
    %1511 = vmatprep.mubr.f32.mxu0 0.0
    %1512 = vmatmul.mubr.f32.gmra.mxu0 %v1374
    %v1513 = vpop.f32.mrf.mxu0
    %v1514 = vadd.f32 0.0, %v1513
    %v1515 = vpop.f32.mrf.mxu0
    %v1516 = vadd.f32 0.0, %v1515
    %1517 = vdwg.mxu0
    %v1522 = vrot.slane %v1443, 4
    %v1523 = vrot.slane %v1445, 4
    %v1524 = vrot.slane %v1514, 4
    %v1525 = vrot.slane %v1516, 4
    %v1530 = vadd.f32 %v200, %v1522
    %v1531 = vadd.f32 %v202, %v1523
    %v1532 = vadd.f32 %v277, %v1524
    %v1533 = vadd.f32 %v279, %v1525
    %v1534 = vxor.u32 %v1530, 2147483648
    %v1535 = vmul.f32 %v1534, 1.442695
    %v1536 = vpow.pop %v1535
    %v1537 = vadd.f32 %v1536, 1.0
    %v1538 = vrcp.pop %v1537
    %v1539 = vmul.f32 1.0, %v1538
    %v1540 = vxor.u32 %v1531, 2147483648
    %v1541 = vmul.f32 %v1540, 1.442695
    %v1542 = vpow.pop %v1541
    %v1543 = vadd.f32 %v1542, 1.0
    %v1544 = vrcp.pop %v1543
    %v1545 = vmul.f32 1.0, %v1544
    %v1546 = vtanh.pop %v1532
    %v1547 = vxor.u32 %v1533, 2147483648
    %v1548 = vmul.f32 %v1547, 1.442695
    %v1549 = vpow.pop %v1548
    %v1550 = vadd.f32 %v1549, 1.0
    %v1551 = vrcp.pop %v1550
    %v1552 = vmul.f32 1.0, %v1551
    %v1554 = vrot.slane %v1370, 6
    %v1556 = vmul.f32 %v1545, %v1554
    %v1557 = vmul.f32 %v1539, %v1546
    %v1558 = vadd.f32 %v1556, %v1557
    %v1559 = vtanh.pop %v1558
    %v1560 = vmul.f32 %v1552, %v1559
    %v1562 = vrot.slane %v1560, 4
    %1564 = vmatprep.subr.mxu0 %v85
    %1565 = vmatpush1.msra.mxu0 %v84
    %1566 = vmatprep.subr.mxu0 %v81
    %1567 = vmatpush1.msra.mxu0 %v80
    %1568 = vmatprep.subr.mxu0 %v77
    %1569 = vmatpush1.msra.mxu0 %v76
    %1570 = vmatprep.subr.mxu0 %v73
    %1571 = vmatpush1.msra.mxu0 %v72
    %1572 = vmatprep.subr.mxu0 %v69
    %1573 = vmatpush1.msra.mxu0 %v68
    %1574 = vmatprep.subr.mxu0 %v65
    %1575 = vmatpush1.msra.mxu0 %v64
    %1576 = vmatprep.subr.mxu0 %v61
    %1577 = vmatpush1.msra.mxu0 %v60
    %1578 = vmatprep.subr.mxu0 %v57
    %1579 = vmatpush1.msra.mxu0 %v56
    %1580 = vmatprep.subr.mxu0 %v53
    %1581 = vmatpush1.msra.mxu0 %v52
    %1582 = vmatprep.subr.mxu0 %v49
    %1583 = vmatpush1.msra.mxu0 %v48
    %1584 = vmatprep.subr.mxu0 %v45
    %1585 = vmatpush1.msra.mxu0 %v44
    %1586 = vmatprep.subr.mxu0 %v41
    %1587 = vmatpush1.msra.mxu0 %v40
    %1588 = vmatprep.subr.mxu0 %v37
    %1589 = vmatpush1.msra.mxu0 %v36
    %1590 = vmatprep.subr.mxu0 %v33
    %1591 = vmatpush1.msra.mxu0 %v32
    %1592 = vmatprep.subr.mxu0 %v29
    %1593 = vmatpush1.msra.mxu0 %v28
    %1594 = vmatprep.subr.mxu0 %v25
    %1595 = vmatpush1.msra.mxu0 %v24
    %1596 = vmatprep.subr.mxu0 0.0
    %1597 = vmatpush2.msra.mxu0 0.0
    %1598 = vmatprep.subr.mxu0 0.0
    %1599 = vmatpush2.msra.mxu0 0.0
    %1600 = vmatprep.subr.mxu0 0.0
    %1601 = vmatpush2.msra.mxu0 0.0
    %1602 = vmatprep.subr.mxu0 0.0
    %1603 = vmatpush2.msra.mxu0 0.0
    %1604 = vmatprep.subr.mxu0 0.0
    %1605 = vmatpush2.msra.mxu0 0.0
    %1606 = vmatprep.subr.mxu0 0.0
    %1607 = vmatpush2.msra.mxu0 0.0
    %1608 = vmatprep.subr.mxu0 0.0
    %1609 = vmatpush2.msra.mxu0 0.0
    %1610 = vmatprep.subr.mxu0 0.0
    %1611 = vmatpush2.msra.mxu0 0.0
    %1612 = vmatprep.subr.mxu0 0.0
    %1613 = vmatpush2.msra.mxu0 0.0
    %1614 = vmatprep.subr.mxu0 0.0
    %1615 = vmatpush2.msra.mxu0 0.0
    %1616 = vmatprep.subr.mxu0 0.0
    %1617 = vmatpush2.msra.mxu0 0.0
    %1618 = vmatprep.subr.mxu0 0.0
    %1619 = vmatpush2.msra.mxu0 0.0
    %1620 = vmatprep.subr.mxu0 0.0
    %1621 = vmatpush2.msra.mxu0 0.0
    %1622 = vmatprep.subr.mxu0 0.0
    %1623 = vmatpush2.msra.mxu0 0.0
    %1624 = vmatprep.subr.mxu0 0.0
    %1625 = vmatpush2.msra.mxu0 0.0
    %1626 = vmatprep.subr.mxu0 0.0
    %1627 = vmatpush2.msra.mxu0 0.0
    %1628 = vmatprep.mubr.f32.mxu0 0.0
    %1629 = vmatmul.mubr.f32.gmra.mxu0 %v1562
    %v1630 = vpop.f32.mrf.mxu0
    %v1631 = vadd.f32 0.0, %v1630
    %v1632 = vpop.f32.mrf.mxu0
    %v1633 = vadd.f32 0.0, %v1632
    %1634 = vdwg.mxu0
    %1635 = vmatprep.subr.mxu0 %v87
    %1636 = vmatpush1.msra.mxu0 %v86
    %1637 = vmatprep.subr.mxu0 %v83
    %1638 = vmatpush1.msra.mxu0 %v82
    %1639 = vmatprep.subr.mxu0 %v79
    %1640 = vmatpush1.msra.mxu0 %v78
    %1641 = vmatprep.subr.mxu0 %v75
    %1642 = vmatpush1.msra.mxu0 %v74
    %1643 = vmatprep.subr.mxu0 %v71
    %1644 = vmatpush1.msra.mxu0 %v70
    %1645 = vmatprep.subr.mxu0 %v67
    %1646 = vmatpush1.msra.mxu0 %v66
    %1647 = vmatprep.subr.mxu0 %v63
    %1648 = vmatpush1.msra.mxu0 %v62
    %1649 = vmatprep.subr.mxu0 %v59
    %1650 = vmatpush1.msra.mxu0 %v58
    %1651 = vmatprep.subr.mxu0 %v55
    %1652 = vmatpush1.msra.mxu0 %v54
    %1653 = vmatprep.subr.mxu0 %v51
    %1654 = vmatpush1.msra.mxu0 %v50
    %1655 = vmatprep.subr.mxu0 %v47
    %1656 = vmatpush1.msra.mxu0 %v46
    %1657 = vmatprep.subr.mxu0 %v43
    %1658 = vmatpush1.msra.mxu0 %v42
    %1659 = vmatprep.subr.mxu0 %v39
    %1660 = vmatpush1.msra.mxu0 %v38
    %1661 = vmatprep.subr.mxu0 %v35
    %1662 = vmatpush1.msra.mxu0 %v34
    %1663 = vmatprep.subr.mxu0 %v31
    %1664 = vmatpush1.msra.mxu0 %v30
    %1665 = vmatprep.subr.mxu0 %v27
    %1666 = vmatpush1.msra.mxu0 %v26
    %1667 = vmatprep.subr.mxu0 0.0
    %1668 = vmatpush2.msra.mxu0 0.0
    %1669 = vmatprep.subr.mxu0 0.0
    %1670 = vmatpush2.msra.mxu0 0.0
    %1671 = vmatprep.subr.mxu0 0.0
    %1672 = vmatpush2.msra.mxu0 0.0
    %1673 = vmatprep.subr.mxu0 0.0
    %1674 = vmatpush2.msra.mxu0 0.0
    %1675 = vmatprep.subr.mxu0 0.0
    %1676 = vmatpush2.msra.mxu0 0.0
    %1677 = vmatprep.subr.mxu0 0.0
    %1678 = vmatpush2.msra.mxu0 0.0
    %1679 = vmatprep.subr.mxu0 0.0
    %1680 = vmatpush2.msra.mxu0 0.0
    %1681 = vmatprep.subr.mxu0 0.0
    %1682 = vmatpush2.msra.mxu0 0.0
    %1683 = vmatprep.subr.mxu0 0.0
    %1684 = vmatpush2.msra.mxu0 0.0
    %1685 = vmatprep.subr.mxu0 0.0
    %1686 = vmatpush2.msra.mxu0 0.0
    %1687 = vmatprep.subr.mxu0 0.0
    %1688 = vmatpush2.msra.mxu0 0.0
    %1689 = vmatprep.subr.mxu0 0.0
    %1690 = vmatpush2.msra.mxu0 0.0
    %1691 = vmatprep.subr.mxu0 0.0
    %1692 = vmatpush2.msra.mxu0 0.0
    %1693 = vmatprep.subr.mxu0 0.0
    %1694 = vmatpush2.msra.mxu0 0.0
    %1695 = vmatprep.subr.mxu0 0.0
    %1696 = vmatpush2.msra.mxu0 0.0
    %1697 = vmatprep.subr.mxu0 0.0
    %1698 = vmatpush2.msra.mxu0 0.0
    %1699 = vmatprep.mubr.f32.mxu0 0.0
    %1700 = vmatmul.mubr.f32.gmra.mxu0 %v1562
    %v1701 = vpop.f32.mrf.mxu0
    %v1702 = vadd.f32 0.0, %v1701
    %v1703 = vpop.f32.mrf.mxu0
    %v1704 = vadd.f32 0.0, %v1703
    %1705 = vdwg.mxu0
    %v1710 = vrot.slane %v1631, 2
    %v1711 = vrot.slane %v1633, 2
    %v1712 = vrot.slane %v1702, 2
    %v1713 = vrot.slane %v1704, 2
    %v1718 = vadd.f32 %v200, %v1710
    %v1719 = vadd.f32 %v202, %v1711
    %v1720 = vadd.f32 %v277, %v1712
    %v1721 = vadd.f32 %v279, %v1713
    %v1722 = vxor.u32 %v1718, 2147483648
    %v1723 = vmul.f32 %v1722, 1.442695
    %v1724 = vpow.pop %v1723
    %v1725 = vadd.f32 %v1724, 1.0
    %v1726 = vrcp.pop %v1725
    %v1727 = vmul.f32 1.0, %v1726
    %v1728 = vxor.u32 %v1719, 2147483648
    %v1729 = vmul.f32 %v1728, 1.442695
    %v1730 = vpow.pop %v1729
    %v1731 = vadd.f32 %v1730, 1.0
    %v1732 = vrcp.pop %v1731
    %v1733 = vmul.f32 1.0, %v1732
    %v1734 = vtanh.pop %v1720
    %v1735 = vxor.u32 %v1721, 2147483648
    %v1736 = vmul.f32 %v1735, 1.442695
    %v1737 = vpow.pop %v1736
    %v1738 = vadd.f32 %v1737, 1.0
    %v1739 = vrcp.pop %v1738
    %v1740 = vmul.f32 1.0, %v1739
    %v1742 = vrot.slane %v1558, 6
    %v1744 = vmul.f32 %v1733, %v1742
    %v1745 = vmul.f32 %v1727, %v1734
    %v1746 = vadd.f32 %v1744, %v1745
    %v1747 = vtanh.pop %v1746
    %v1748 = vmul.f32 %v1740, %v1747
    %v1749 = vld [vmem:[%s4] sm:$0xff]
    %v1750 = vld [vmem:[%s4 + $0x8] sm:$0xff]
    %v1751 = vld [vmem:[%s4 + $0x10] sm:$0xff]
    %v1752 = vld [vmem:[%s4 + $0x18] sm:$0xff]
    %v1753 = vld [vmem:[%s4 + $0x20] sm:$0xff]
    %v1754 = vld [vmem:[%s4 + $0x28] sm:$0xff]
    %v1755 = vld [vmem:[%s4 + $0x30] sm:$0xff]
    %v1756 = vld [vmem:[%s4 + $0x38] sm:$0xff]
    %v1757 = vld [vmem:[%s4 + $0x40] sm:$0xff]
    %v1758 = vld [vmem:[%s4 + $0x48] sm:$0xff]
    %v1759 = vld [vmem:[%s4 + $0x50] sm:$0xff]
    %v1760 = vld [vmem:[%s4 + $0x58] sm:$0xff]
    %v1761 = vld [vmem:[%s4 + $0x60] sm:$0xff]
    %v1762 = vld [vmem:[%s4 + $0x68] sm:$0xff]
    %v1763 = vld [vmem:[%s4 + $0x70] sm:$0xff]
    %v1764 = vld [vmem:[%s4 + $0x78] sm:$0xff]
    %v1765 = vld [vmem:[%s5] sm:$0x1]
    %v1767 = vlaneseq
    %v1768 = vshrl.u32 %v1767, 7
    %v1769 = vsub.s32 0, %v1768
    %v1770 = vrot.slane %v1765, %v1769
    %v1773 = vrot.slane %v1748, 6
    %1775 = vmatprep.subr.mxu0 0.0
    %1776 = vmatpush1.msra.mxu0 %v1764
    %1777 = vmatprep.subr.mxu0 0.0
    %1778 = vmatpush1.msra.mxu0 %v1763
    %1779 = vmatprep.subr.mxu0 0.0
    %1780 = vmatpush1.msra.mxu0 %v1762
    %1781 = vmatprep.subr.mxu0 0.0
    %1782 = vmatpush1.msra.mxu0 %v1761
    %1783 = vmatprep.subr.mxu0 0.0
    %1784 = vmatpush1.msra.mxu0 %v1760
    %1785 = vmatprep.subr.mxu0 0.0
    %1786 = vmatpush1.msra.mxu0 %v1759
    %1787 = vmatprep.subr.mxu0 0.0
    %1788 = vmatpush1.msra.mxu0 %v1758
    %1789 = vmatprep.subr.mxu0 0.0
    %1790 = vmatpush1.msra.mxu0 %v1757
    %1791 = vmatprep.subr.mxu0 0.0
    %1792 = vmatpush1.msra.mxu0 %v1756
    %1793 = vmatprep.subr.mxu0 0.0
    %1794 = vmatpush1.msra.mxu0 %v1755
    %1795 = vmatprep.subr.mxu0 0.0
    %1796 = vmatpush1.msra.mxu0 %v1754
    %1797 = vmatprep.subr.mxu0 0.0
    %1798 = vmatpush1.msra.mxu0 %v1753
    %1799 = vmatprep.subr.mxu0 0.0
    %1800 = vmatpush1.msra.mxu0 %v1752
    %1801 = vmatprep.subr.mxu0 0.0
    %1802 = vmatpush1.msra.mxu0 %v1751
    %1803 = vmatprep.subr.mxu0 0.0
    %1804 = vmatpush1.msra.mxu0 %v1750
    %1805 = vmatprep.subr.mxu0 0.0
    %1806 = vmatpush1.msra.mxu0 %v1749
    %1807 = vmatprep.subr.mxu0 0.0
    %1808 = vmatpush2.msra.mxu0 0.0
    %1809 = vmatprep.subr.mxu0 0.0
    %1810 = vmatpush2.msra.mxu0 0.0
    %1811 = vmatprep.subr.mxu0 0.0
    %1812 = vmatpush2.msra.mxu0 0.0
    %1813 = vmatprep.subr.mxu0 0.0
    %1814 = vmatpush2.msra.mxu0 0.0
    %1815 = vmatprep.subr.mxu0 0.0
    %1816 = vmatpush2.msra.mxu0 0.0
    %1817 = vmatprep.subr.mxu0 0.0
    %1818 = vmatpush2.msra.mxu0 0.0
    %1819 = vmatprep.subr.mxu0 0.0
    %1820 = vmatpush2.msra.mxu0 0.0
    %1821 = vmatprep.subr.mxu0 0.0
    %1822 = vmatpush2.msra.mxu0 0.0
    %1823 = vmatprep.subr.mxu0 0.0
    %1824 = vmatpush2.msra.mxu0 0.0
    %1825 = vmatprep.subr.mxu0 0.0
    %1826 = vmatpush2.msra.mxu0 0.0
    %1827 = vmatprep.subr.mxu0 0.0
    %1828 = vmatpush2.msra.mxu0 0.0
    %1829 = vmatprep.subr.mxu0 0.0
    %1830 = vmatpush2.msra.mxu0 0.0
    %1831 = vmatprep.subr.mxu0 0.0
    %1832 = vmatpush2.msra.mxu0 0.0
    %1833 = vmatprep.subr.mxu0 0.0
    %1834 = vmatpush2.msra.mxu0 0.0
    %1835 = vmatprep.subr.mxu0 0.0
    %1836 = vmatpush2.msra.mxu0 0.0
    %1837 = vmatprep.subr.mxu0 0.0
    %1838 = vmatpush2.msra.mxu0 0.0
    %1839 = vmatprep.mubr.f32.mxu0 0.0
    %1840 = vmatmul.mubr.f32.gmra.mxu0 %v1773
    %v1841 = vpop.f32.mrf.mxu0
    %v1842 = vadd.f32 %v1770, %v1841
    %v1843 = vpop.f32.mrf.mxu0
    %1844 = vdwg.mxu0
    %v1845 = vxor.u32 %v1842, 2147483648
    %v1846 = vmul.f32 %v1845, 1.442695
    %v1847 = vpow.pop %v1846
    %v1848 = vadd.f32 %v1847, 1.0
    %v1849 = vrcp.pop %v1848
    %v1850 = vmul.f32 1.0, %v1849
    %1851 = vst [vmem:[#allocation2] sm:$0x3] %v1850
    // Predicated region
    $region26: #{lstm_model_forward.1} parent=1 // pred_check
      _
    $region27: #{lstm_model_forward.1} parent=1 // pred_check_branch
      %1853 = sbr.rel (0) target = $region29
    $region28: #{lstm_model_forward.1} parent=1 // pred_region
      %s1855 = ssub.s32 32, 32
      %1856 = vsyncadd [#allocation3], %s1855
      %s1858 = sshll.u32 [#allocation2], 4
      %s1859 = int_to_ptr.vmem [resolvable:$true] %s1858
      %1861 = dma.vmem_to_hbm [thread:$0]  %s1859, 32, %s6, [#allocation3]
    $region29: #{lstm_model_forward.1} parent=1 // pred_fallthru
      _
    // Predicated region
    $region30: #{lstm_model_forward.1} parent=1 // pred_check
      _
    $region31: #{lstm_model_forward.1} parent=1 // pred_check_branch
      %1863 = sbr.rel (0) target = $region33
    $region32: #{lstm_model_forward.1} parent=1 // pred_region
      %1864 = dma.done [#allocation3], 32
    $region33: #{lstm_model_forward.1} parent=1 // pred_fallthru
      _
    %1865 = vsyncpa [#allocation3], 1

</llo_original>
